<compile_context>
chip_gen: v7x
topology: tpu7x:2x2x1
jax: 0.10.0
libtpu: 0.0.40
codegen_flags: <defaults>
</compile_context>

<pallas_src>
import functools

import jax
import jax.numpy as jnp
from jax.experimental import pallas as pl
from jax.experimental.pallas import tpu as pltpu


# ----------------------------- kernel ------------------------------------- #

def base_block_kernel(x_ref, *refs, R, K, pad, T, compute_dtype):
    # refs layout: [w0] (+ [w_rest] if R > 1) + [bias_stack, res_w, o_ref]
    o_ref = refs[-1]
    res_w_ref = refs[-2]
    bias_ref = refs[-3]
    w0_ref = refs[0]
    w_rest_ref = refs[1] if R > 1 else None

    Tt = x_ref.shape[-1]

    # Position of each lane within its sequence.  Tiles span whole sequences,
    # so (col % T) is grid-invariant; masks zero out taps that would read
    # across a sequence/batch seam -> identical to PyTorch zero padding.
    col = jax.lax.broadcasted_iota(jnp.int32, (1, Tt), 1)
    pos = col % T
    masks = {}
    for k in range(K):
        s = k - pad
        if s != 0:
            masks[k] = (pos >= -s) & (pos < T - s)        # (1, Tt), broadcasts over C

    def stack_taps(h):
        # h: (ci, Tt).  Rows [k*ci:(k+1)*ci] hold h shifted by (k - pad) lanes
        # with out-of-sequence positions zeroed, so one MXU matmul against the
        # tap-folded weights performs depthwise + pointwise + BN.
        parts = []
        for k in range(K):
            s = k - pad
            if s == 0:
                parts.append(h)
            else:
                shifted = pltpu.roll(h, (-s) % Tt, axis=1)   # shifted[t] = h[t + s]
                parts.append(jnp.where(masks[k], shifted, jnp.zeros_like(shifted)))
        return jnp.concatenate(parts, axis=0)                # (K*ci, Tt)

    h = x_ref[...].astype(compute_dtype)
    acc = None
    for i in range(R):
        w = w0_ref[...] if i == 0 else w_rest_ref[i - 1]     # (C_out, K*ci) bf16
        stacked = stack_taps(h).astype(w.dtype)
        acc = jnp.dot(w, stacked, preferred_element_type=jnp.float32) + bias_ref[i]
        if i != R - 1:
            h = jnp.maximum(acc, 0.0).astype(compute_dtype)
            # TODO(synk): nn.Dropout is stochastic in train mode; identity here (eval).

    # Residual branch: folded 1x1 conv + BN on the original input.  Re-read the
    # input tile here so it is not held live across all R repeats.
    rw = res_w_ref[...]                                      # (C_out, C_in) bf16
    res = jnp.dot(rw, x_ref[...].astype(rw.dtype),
                  preferred_element_type=jnp.float32) + bias_ref[R]

    o_ref[...] = jnp.maximum(acc + res, 0.0).astype(o_ref.dtype)


# ----------------------------- wrapper ------------------------------------ #

def _elementwise_dtype():
    # bf16 VALU exists on v6e/v7x only; everything else keeps f32 (always correct).
    try:
        kind = jax.devices()[0].device_kind.lower()
    except Exception:
        return jnp.float32
    return jnp.bfloat16 if ("v6" in kind or "v7" in kind) else jnp.float32


def base_block_forward(x, params, *, R, K, mxu_dtype=jnp.bfloat16,
                       target_lane_tile=512):
    B, C_in, T = x.shape
    assert K % 2 == 1, "only odd K matches PyTorch 'same' padding here"
    pad = (K - 1) // 2
    C_out = params["res_w"].shape[0]
    total = B * T

    # ---- lane tiling: each tile covers whole sequences (no halo needed) ----
    seqs_per_tile = max(1, min(B, max(1, target_lane_tile // T)))
    while B % seqs_per_tile != 0:
        seqs_per_tile -= 1
    if B // seqs_per_tile < 2 and B >= 2:
        # guarantee >= 2 parallel blocks so both v7x TensorCores are fed
        seqs_per_tile = max(d for d in range(1, B // 2 + 1) if B % d == 0)
    Tt = seqs_per_tile * T
    if Tt % 128 != 0 and Tt != total:
        seqs_per_tile, Tt = B, total                 # fall back to one full tile
    num_tiles = B // seqs_per_tile

    # ---- host-side constant folding (one-time, outside the kernel) ----
    #   eff_w[o, k*ci + c] = bn_s[o] * pw_w[o, c] * dw_w[c, k]
    #   eff_b = bn_s * (pw_w @ dw_b + pw_b) + bn_o
    #   res_w_eff = res_s * res_w ; res_b_eff = res_s * res_b + res_o
    ci = C_in
    w0 = None
    weights_rest = []
    biases = []
    flops = 0
    for i in range(R):
        rep = params["reps"][i]
        folded = rep["bn_s"] * rep["pw_w"]                                  # (C_out, ci)
        eff_w = jnp.concatenate([folded * rep["dw_w"][None, :, k]
                                 for k in range(K)], axis=1)                # (C_out, K*ci)
        eff_b = (rep["bn_s"] * (rep["pw_w"] @ rep["dw_b"] + rep["pw_b"])
                 + rep["bn_o"]).astype(jnp.float32)                         # (C_out, 1)
        if i == 0:
            w0 = eff_w.astype(mxu_dtype)
        else:
            weights_rest.append(eff_w.astype(mxu_dtype))
        biases.append(eff_b)
        flops += 2 * total * C_out * (K * ci)
        ci = C_out

    res_w_eff = (params["res_s"] * params["res_w"]).astype(mxu_dtype)       # (C_out, C_in)
    res_b_eff = (params["res_s"] * params["res_b"]
                 + params["res_o"]).astype(jnp.float32)                     # (C_out, 1)
    biases.append(res_b_eff)
    bias_stack = jnp.stack(biases, axis=0)                                  # (R+1, C_out, 1)
    flops += 2 * total * C_out * C_in

    # ---- layout plumbing: (B, C, T) -> (C, B*T) lane-dense slab ----
    x2d = jnp.reshape(jnp.transpose(x, (1, 0, 2)), (C_in, total))

    flat = [w0]
    if R > 1:
        flat.append(jnp.stack(weights_rest, axis=0))        # (R-1, C_out, K*C_out)
    flat += [bias_stack, res_w_eff]

    in_specs = [pl.BlockSpec((C_in, Tt), lambda t: (0, t))]
    for a in flat:
        in_specs.append(pl.BlockSpec(a.shape, lambda t, _nd=a.ndim: (0,) * _nd))

    bytes_accessed = int(
        x2d.size * x2d.dtype.itemsize
        + C_out * total * x.dtype.itemsize
        + sum(int(a.size) * a.dtype.itemsize for a in flat))
    cost = pl.CostEstimate(flops=int(flops), transcendentals=0,
                           bytes_accessed=bytes_accessed)

    kernel = functools.partial(base_block_kernel, R=R, K=K, pad=pad, T=T,
                               compute_dtype=_elementwise_dtype())

    out2d = pl.pallas_call(
        kernel,
        out_shape=jax.ShapeDtypeStruct((C_out, total), x.dtype),
        grid_spec=pltpu.PrefetchScalarGridSpec(
            num_scalar_prefetch=0,
            grid=(num_tiles,),
            in_specs=in_specs,
            out_specs=pl.BlockSpec((C_out, Tt), lambda t: (0, t)),
        ),
        compiler_params=pltpu.CompilerParams(
            dimension_semantics=("parallel",)),
        cost_estimate=cost,
    )(x2d, *flat)

    return jnp.transpose(jnp.reshape(out2d, (C_out, B, T)), (1, 0, 2))


# --------------------- deterministic parameter init ----------------------- #

def init_params(key, c_in, c_out, R, K, eps=1e-5):
    reps = []
    ci = c_in
    for _ in range(R):
        key, *ks = jax.random.split(key, 9)
        dw_w = 0.2 * jax.random.normal(ks[0], (ci, K), jnp.float32)
        dw_b = 0.1 * jax.random.normal(ks[1], (ci, 1), jnp.float32)
        pw_w = jax.random.normal(ks[2], (c_out, ci), jnp.float32) * (1.0 / ci) ** 0.5
        pw_b = 0.1 * jax.random.normal(ks[3], (c_out, 1), jnp.float32)
        gamma = 1.0 + 0.1 * jax.random.normal(ks[4], (c_out, 1), jnp.float32)
        beta = 0.1 * jax.random.normal(ks[5], (c_out, 1), jnp.float32)
        r_mean = 0.1 * jax.random.normal(ks[6], (c_out, 1), jnp.float32)
        r_var = jnp.abs(jax.random.normal(ks[7], (c_out, 1), jnp.float32)) + 0.5
        scale = gamma / jnp.sqrt(r_var + eps)
        shift = beta - r_mean * scale
        reps.append(dict(dw_w=dw_w, dw_b=dw_b, pw_w=pw_w, pw_b=pw_b,
                         bn_s=scale, bn_o=shift))
        ci = c_out

    key, *ks = jax.random.split(key, 7)
    res_w = jax.random.normal(ks[0], (c_out, c_in), jnp.float32) * (1.0 / c_in) ** 0.5
    res_b = 0.1 * jax.random.normal(ks[1], (c_out, 1), jnp.float32)
    gamma = 1.0 + 0.1 * jax.random.normal(ks[2], (c_out, 1), jnp.float32)
    beta = 0.1 * jax.random.normal(ks[3], (c_out, 1), jnp.float32)
    r_mean = 0.1 * jax.random.normal(ks[4], (c_out, 1), jnp.float32)
    r_var = jnp.abs(jax.random.normal(ks[5], (c_out, 1), jnp.float32)) + 0.5
    res_s = gamma / jnp.sqrt(r_var + eps)
    res_o = beta - r_mean * res_s
    return dict(reps=reps, res_w=res_w, res_b=res_b, res_s=res_s, res_o=res_o)


# --------------------------- pure-JAX reference ---------------------------- #

def ref_forward(x, params, R, K):
    pad = (K - 1) // 2
    h = x.astype(jnp.float32)
    for i in range(R):
        p = params["reps"][i]
        T = h.shape[2]
        xp = jnp.pad(h, ((0, 0), (0, 0), (pad, pad)))
        dw = sum(p["dw_w"][None, :, k:k + 1] * xp[:, :, k:k + T] for k in range(K))
        dw = dw + p["dw_b"][None]
        pw = jnp.einsum("oc,bct->bot", p["pw_w"], dw) + p["pw_b"][None]
        h = pw * p["bn_s"][None] + p["bn_o"][None]
        if i != R - 1:
            h = jnp.maximum(h, 0.0)
    res = jnp.einsum("oc,bct->bot", params["res_w"], x.astype(jnp.float32))
    res = res + params["res_b"][None]
    res = res * params["res_s"][None] + params["res_o"][None]
    return jnp.maximum(h + res, 0.0)


# --------------------------------- main ------------------------------------ #

if __name__ == "__main__":
    B, C_IN, C_OUT, T, K, R = 4, 32, 64, 256, 3, 2

    key = jax.random.PRNGKey(0)
    key, xk = jax.random.split(key)
    x = jax.random.normal(xk, (B, C_IN, T), jnp.float32)

    params = init_params(key, C_IN, C_OUT, R, K)

    out = base_block_forward(x, params, R=R, K=K)
    out = jax.block_until_ready(out)

    ref = ref_forward(x, params, R, K)
    assert out.shape == (B, C_OUT, T), out.shape
    # bf16 MXU operands (f32 accumulate), optionally bf16 elementwise on v6e/v7x
    # -> ~1e-2 absolute error vs the f32 reference.
    assert jnp.allclose(out, ref, atol=3e-2, rtol=3e-2), \
        float(jnp.max(jnp.abs(out - ref)))

    print("KERNEL_OK")
</pallas_src>

<mosaic_0001>
module attributes {stable_mosaic.version = 11 : i64} {
  func.func @base_block_kernel(%arg0: i32, %arg1: memref<32x512xf32, #tpu.memory_space<vmem>>, %arg2: memref<64x96xbf16, #tpu.memory_space<vmem>>, %arg3: memref<1x64x192xbf16, #tpu.memory_space<vmem>>, %arg4: memref<3x64x1xf32, #tpu.memory_space<vmem>>, %arg5: memref<64x32xbf16, #tpu.memory_space<vmem>>, %arg6: memref<64x512xf32, #tpu.memory_space<vmem>>) attributes {dimension_semantics = [#tpu.dimension_semantics<parallel>], iteration_bounds = array<i64: 2>, scalar_prefetch = 0 : i64, scratch_operands = 0 : i64, tpu.core_type = #tpu.core_type<tc>, window_params = [{transform_indices = @transform_0, window_bounds = array<i64: 32, 512>}, {pipeline_mode = #tpu.pipeline_mode<synchronous>, transform_indices = @transform_1, window_bounds = array<i64: 64, 96>}, {pipeline_mode = #tpu.pipeline_mode<synchronous>, transform_indices = @transform_2, window_bounds = array<i64: 1, 64, 192>}, {pipeline_mode = #tpu.pipeline_mode<synchronous>, transform_indices = @transform_3, window_bounds = array<i64: 3, 64, 1>}, {pipeline_mode = #tpu.pipeline_mode<synchronous>, transform_indices = @transform_4, window_bounds = array<i64: 64, 32>}, {transform_indices = @transform_5, window_bounds = array<i64: 64, 512>}]} {
    %0 = tpu.iota {dimensions = array<i32: 1>} : vector<1x512xi32>
    %c256_i32 = arith.constant 256 : i32
    %c0_i32 = arith.constant 0 : i32
    %1 = arith.cmpi eq, %c256_i32, %c0_i32 : i32
    %c1_i32 = arith.constant 1 : i32
    %2 = arith.select %1, %c1_i32, %c256_i32 : i32
    %3 = vector.broadcast %2 : i32 to vector<1x512xi32>
    %4 = arith.remsi %0, %3 : vector<1x512xi32>
    %c0_i32_0 = arith.constant 0 : i32
    %5 = vector.broadcast %c0_i32_0 : i32 to vector<1x512xi32>
    %6 = arith.cmpi ne, %4, %5 : vector<1x512xi32>
    %c0_i32_1 = arith.constant 0 : i32
    %7 = vector.broadcast %c0_i32_1 : i32 to vector<1x512xi32>
    %8 = arith.cmpi slt, %4, %7 : vector<1x512xi32>
    %c0_i32_2 = arith.constant 0 : i32
    %9 = arith.cmpi slt, %2, %c0_i32_2 : i32
    %10 = vector.broadcast %9 : i1 to vector<1x512xi1>
    %11 = vector.broadcast %10 : vector<1x512xi1> to vector<1x512xi1>
    %12 = arith.xori %8, %11 : vector<1x512xi1>
    %13 = arith.andi %12, %6 : vector<1x512xi1>
    %14 = vector.broadcast %2 : i32 to vector<1x512xi32>
    %15 = arith.addi %4, %14 : vector<1x512xi32>
    %16 = arith.select %13, %15, %4 : vector<1x512xi1>, vector<1x512xi32>
    %c1_i32_3 = arith.constant 1 : i32
    %17 = vector.broadcast %c1_i32_3 : i32 to vector<1x512xi32>
    %18 = arith.cmpi sge, %16, %17 : vector<1x512xi32>
    %c257_i32 = arith.constant 257 : i32
    %19 = vector.broadcast %c257_i32 : i32 to vector<1x512xi32>
    %20 = arith.cmpi slt, %16, %19 : vector<1x512xi32>
    %21 = arith.andi %18, %20 : vector<1x512xi1>
    %c-1_i32 = arith.constant -1 : i32
    %22 = vector.broadcast %c-1_i32 : i32 to vector<1x512xi32>
    %23 = arith.cmpi sge, %16, %22 : vector<1x512xi32>
    %c255_i32 = arith.constant 255 : i32
    %24 = vector.broadcast %c255_i32 : i32 to vector<1x512xi32>
    %25 = arith.cmpi slt, %16, %24 : vector<1x512xi32>
    %26 = arith.andi %23, %25 : vector<1x512xi1>
    %c0 = arith.constant 0 : index
    %c0_4 = arith.constant 0 : index
    %27 = vector.load %arg1[%c0, %c0_4] : memref<32x512xf32, #tpu.memory_space<vmem>>, vector<32x512xf32>
    %c0_5 = arith.constant 0 : index
    %c0_6 = arith.constant 0 : index
    %28 = vector.load %arg2[%c0_5, %c0_6] : memref<64x96xbf16, #tpu.memory_space<vmem>>, vector<64x96xbf16>
    %c1_i32_7 = arith.constant 1 : i32
    %29 = tpu.dynamic_rotate %27 by %c1_i32_7 dim 1 : vector<32x512xf32>, i32 -> vector<32x512xf32>
    %cst = arith.constant 0.000000e+00 : f32
    %30 = vector.broadcast %cst : f32 to vector<32x512xf32>
    %31 = vector.shape_cast %21 : vector<1x512xi1> to vector<1x512xi1>
    %32 = vector.broadcast %31 : vector<1x512xi1> to vector<32x512xi1>
    %33 = arith.select %32, %29, %30 : vector<32x512xi1>, vector<32x512xf32>
    %c511_i32 = arith.constant 511 : i32
    %34 = tpu.dynamic_rotate %27 by %c511_i32 dim 1 : vector<32x512xf32>, i32 -> vector<32x512xf32>
    %cst_8 = arith.constant 0.000000e+00 : f32
    %35 = vector.broadcast %cst_8 : f32 to vector<32x512xf32>
    %36 = vector.shape_cast %26 : vector<1x512xi1> to vector<1x512xi1>
    %37 = vector.broadcast %36 : vector<1x512xi1> to vector<32x512xi1>
    %38 = arith.select %37, %34, %35 : vector<32x512xi1>, vector<32x512xf32>
    %39 = tpu.concatenate %33, %27, %38 in 0 : vector<32x512xf32>, vector<32x512xf32>, vector<32x512xf32> -> vector<96x512xf32>
    %40 = arith.truncf %39 : vector<96x512xf32> to vector<96x512xbf16>
    %cst_9 = arith.constant dense<0.000000e+00> : vector<64x512xf32>
    %41 = tpu.matmul %28, %40, %cst_9 {dimension_numbers = #tpu.dot_dimension_numbers<[1], [0], [0], [1], [0, 0, 1, 1], [], []>} : vector<64x96xbf16>, vector<96x512xbf16>, vector<64x512xf32> -> vector<64x512xf32>
    %c0_10 = arith.constant 0 : index
    %c0_11 = arith.constant 0 : index
    %c0_12 = arith.constant 0 : index
    %42 = vector.load %arg4[%c0_10, %c0_11, %c0_12] : memref<3x64x1xf32, #tpu.memory_space<vmem>>, vector<1x64x1xf32>
    %43 = vector.shape_cast %42 : vector<1x64x1xf32> to vector<64x1xf32>
    %44 = vector.broadcast %43 : vector<64x1xf32> to vector<64x512xf32>
    %45 = arith.addf %41, %44 : vector<64x512xf32>
    %cst_13 = arith.constant 0.000000e+00 : f32
    %46 = vector.broadcast %cst_13 : f32 to vector<64x512xf32>
    %47 = arith.maximumf %45, %46 : vector<64x512xf32>
    %c0_14 = arith.constant 0 : index
    %c0_15 = arith.constant 0 : index
    %c0_16 = arith.constant 0 : index
    %48 = vector.load %arg3[%c0_14, %c0_15, %c0_16] : memref<1x64x192xbf16, #tpu.memory_space<vmem>>, vector<1x64x192xbf16>
    %49 = vector.shape_cast %48 : vector<1x64x192xbf16> to vector<64x192xbf16>
    %c1_i32_17 = arith.constant 1 : i32
    %50 = tpu.dynamic_rotate %47 by %c1_i32_17 dim 1 : vector<64x512xf32>, i32 -> vector<64x512xf32>
    %cst_18 = arith.constant 0.000000e+00 : f32
    %51 = vector.broadcast %cst_18 : f32 to vector<64x512xf32>
    %52 = vector.shape_cast %21 : vector<1x512xi1> to vector<1x512xi1>
    %53 = vector.broadcast %52 : vector<1x512xi1> to vector<64x512xi1>
    %54 = arith.select %53, %50, %51 : vector<64x512xi1>, vector<64x512xf32>
    %c511_i32_19 = arith.constant 511 : i32
    %55 = tpu.dynamic_rotate %47 by %c511_i32_19 dim 1 : vector<64x512xf32>, i32 -> vector<64x512xf32>
    %cst_20 = arith.constant 0.000000e+00 : f32
    %56 = vector.broadcast %cst_20 : f32 to vector<64x512xf32>
    %57 = vector.shape_cast %26 : vector<1x512xi1> to vector<1x512xi1>
    %58 = vector.broadcast %57 : vector<1x512xi1> to vector<64x512xi1>
    %59 = arith.select %58, %55, %56 : vector<64x512xi1>, vector<64x512xf32>
    %60 = tpu.concatenate %54, %47, %59 in 0 : vector<64x512xf32>, vector<64x512xf32>, vector<64x512xf32> -> vector<192x512xf32>
    %61 = arith.truncf %60 : vector<192x512xf32> to vector<192x512xbf16>
    %cst_21 = arith.constant dense<0.000000e+00> : vector<64x512xf32>
    %62 = tpu.matmul %49, %61, %cst_21 {dimension_numbers = #tpu.dot_dimension_numbers<[1], [0], [0], [1], [0, 0, 1, 1], [], []>} : vector<64x192xbf16>, vector<192x512xbf16>, vector<64x512xf32> -> vector<64x512xf32>
    %c1 = arith.constant 1 : index
    %c0_22 = arith.constant 0 : index
    %c0_23 = arith.constant 0 : index
    %63 = vector.load %arg4[%c1, %c0_22, %c0_23] : memref<3x64x1xf32, #tpu.memory_space<vmem>>, vector<1x64x1xf32>
    %64 = vector.shape_cast %63 : vector<1x64x1xf32> to vector<64x1xf32>
    %65 = vector.broadcast %64 : vector<64x1xf32> to vector<64x512xf32>
    %66 = arith.addf %62, %65 : vector<64x512xf32>
    %c0_24 = arith.constant 0 : index
    %c0_25 = arith.constant 0 : index
    %67 = vector.load %arg5[%c0_24, %c0_25] : memref<64x32xbf16, #tpu.memory_space<vmem>>, vector<64x32xbf16>
    %c0_26 = arith.constant 0 : index
    %c0_27 = arith.constant 0 : index
    %68 = vector.load %arg1[%c0_26, %c0_27] : memref<32x512xf32, #tpu.memory_space<vmem>>, vector<32x512xf32>
    %69 = arith.truncf %68 : vector<32x512xf32> to vector<32x512xbf16>
    %cst_28 = arith.constant dense<0.000000e+00> : vector<64x512xf32>
    %70 = tpu.matmul %67, %69, %cst_28 {dimension_numbers = #tpu.dot_dimension_numbers<[1], [0], [0], [1], [0, 0, 1, 1], [], []>} : vector<64x32xbf16>, vector<32x512xbf16>, vector<64x512xf32> -> vector<64x512xf32>
    %c2 = arith.constant 2 : index
    %c0_29 = arith.constant 0 : index
    %c0_30 = arith.constant 0 : index
    %71 = vector.load %arg4[%c2, %c0_29, %c0_30] : memref<3x64x1xf32, #tpu.memory_space<vmem>>, vector<1x64x1xf32>
    %72 = vector.shape_cast %71 : vector<1x64x1xf32> to vector<64x1xf32>
    %73 = vector.broadcast %72 : vector<64x1xf32> to vector<64x512xf32>
    %74 = arith.addf %70, %73 : vector<64x512xf32>
    %75 = arith.addf %66, %74 : vector<64x512xf32>
    %cst_31 = arith.constant 0.000000e+00 : f32
    %76 = vector.broadcast %cst_31 : f32 to vector<64x512xf32>
    %77 = arith.maximumf %75, %76 : vector<64x512xf32>
    %c0_32 = arith.constant 0 : index
    %c0_33 = arith.constant 0 : index
    %78 = vector.load %arg6[%c0_32, %c0_33] : memref<64x512xf32, #tpu.memory_space<vmem>>, vector<64x512xf32>
    tpu.vector_store %arg6[%c0_32, %c0_33], %77 {strides = array<i32>} : memref<64x512xf32, #tpu.memory_space<vmem>>, vector<64x512xf32>,
    return
  }
  func.func @transform_0(%arg0: i32) -> (i32, i32) {
    %c0_i32 = arith.constant 0 : i32
    %c0_i32_0 = arith.constant 0 : i32
    return %c0_i32, %arg0 : i32, i32
  }
  func.func @transform_1(%arg0: i32) -> (i32, i32) {
    %c0_i32 = arith.constant 0 : i32
    %c0_i32_0 = arith.constant 0 : i32
    %c0_i32_1 = arith.constant 0 : i32
    return %c0_i32, %c0_i32_0 : i32, i32
  }
  func.func @transform_2(%arg0: i32) -> (i32, i32, i32) {
    %c0_i32 = arith.constant 0 : i32
    %c0_i32_0 = arith.constant 0 : i32
    %c0_i32_1 = arith.constant 0 : i32
    %c0_i32_2 = arith.constant 0 : i32
    return %c0_i32, %c0_i32_0, %c0_i32_1 : i32, i32, i32
  }
  func.func @transform_3(%arg0: i32) -> (i32, i32, i32) {
    %c0_i32 = arith.constant 0 : i32
    %c0_i32_0 = arith.constant 0 : i32
    %c0_i32_1 = arith.constant 0 : i32
    %c0_i32_2 = arith.constant 0 : i32
    return %c0_i32, %c0_i32_0, %c0_i32_1 : i32, i32, i32
  }
  func.func @transform_4(%arg0: i32) -> (i32, i32) {
    %c0_i32 = arith.constant 0 : i32
    %c0_i32_0 = arith.constant 0 : i32
    %c0_i32_1 = arith.constant 0 : i32
    return %c0_i32, %c0_i32_0 : i32, i32
  }
  func.func @transform_5(%arg0: i32) -> (i32, i32) {
    %c0_i32 = arith.constant 0 : i32
    %c0_i32_0 = arith.constant 0 : i32
    return %c0_i32, %arg0 : i32, i32
  }
}

</mosaic_0001>

<llo_original>
// kernel: tpu_custom_call.1
$region0: #{tpu_custom_call.1}
  #allocation0 [shape = 'u32[]', space=smem, size = 0x4, offset = 0x4, fixed_abs, tag = 'smem constant byte address 0x4 - core index']
  #allocation1 [shape = 'u32[144,128]{1,0:T(1,128)}', space=vmem, size = 0x12000, scoped, tag = 'internal scratch']
  %s0 = inlined_call_operand.hbm [shape: f32[32,1024], index: 0, kind: input, shape index: {}]
  %s1 = inlined_call_operand.vmem [shape: bf16[64,96], index: 1, kind: input, shape index: {}]
  %s2 = inlined_call_operand.vmem [shape: bf16[1,64,192], index: 2, kind: input, shape index: {}]
  %s3 = inlined_call_operand.vmem [shape: f32[3,64,1], index: 3, kind: input, shape index: {}]
  %s4 = inlined_call_operand.vmem [shape: bf16[64,32], index: 4, kind: input, shape index: {}]
  %s5 = inlined_call_operand.hbm [shape: f32[64,1024], index: 5, kind: output, shape index: {}]
  %s6 = sld [smem:[#allocation0]]
  $region57: #{tpu_custom_call.1} parent=0
    _
  %s8 = ssub.s32 1, %s6
  %s9 = scalar_select 0, %s8, %s6
  $region1: #{tpu_custom_call.1} parent=0
    #allocation2 [shape = 'u8[131072]{0}', space=vmem, size = 0x20000, scoped, tag = 'input window, operand 0']
    #allocation3 [shape = 's32[2]{0}', space=sflag, size = 0x8, scoped, tag = 'scoped memory for tpu_custom_call.1']
    #allocation4 [shape = 's32[2]{0}', space=sflag, size = 0x8, scoped, tag = 'scoped memory for tpu_custom_call.1']
    #allocation5 [shape = 'u8[262144]{0}', space=vmem, size = 0x40000, scoped, tag = 'output window, operand 0']
    %10 = vsyncpa [#allocation3], 0
    %s11 = scalar_lea.sflag [#allocation3], 1
    %12 = vsyncpa %s11, 0
    %13 = vsyncpa [#allocation4], 0
    %s14 = scalar_lea.sflag [#allocation4], 1
    %15 = vsyncpa %s14, 0
    loop: start=0, step=1, limit=4
    $region2: #{tpu_custom_call.1} parent=1 // loop_pre_header
      _
    $region3: #{tpu_custom_call.1} parent=1 // loop_header
      %s17 = sphi 0, %s21
      %p18 = scmp.ge.s32.totalorder %s17, 4
      %s27 = sphi 0, %s29
      %s30 = sphi 0, %s27
      %s31 = sphi 0, %s30
      %s47 = sphi 0, %s31
      %s51 = sphi 0, %s51
      %s53 = sphi 0, %s51
      %s54 = sphi 0, %s53
      %s68 = sphi 0, %s54
      %s72 = sphi 0, %s72
      %s74 = sphi 0, %s72
      %s75 = sphi 0, %s74
      %s89 = sphi 0, %s75
      %s93 = sphi 0, %s93
      %s95 = sphi 0, %s93
      %s96 = sphi 0, %s95
      %s110 = sphi 0, %s96
      %s114 = sphi 0, %s114
      %s116 = sphi 0, %s114
      %s117 = sphi 0, %s116
      %s131 = sphi 0, %s117
      %s137 = sphi 0, %s139
      %s140 = sphi 0, %s137
      %s141 = sphi 0, %s140
      %s157 = sphi 0, %s141
    $region4: #{tpu_custom_call.1} parent=1 // loop_header_branch
      %20 = sbr.rel (%p18) target = $region8
    $region5: #{tpu_custom_call.1} parent=1 // loop_body
      %s22 = ssub.s32 %s17, 1
      %s23 = ssub.s32 %s17, 2
      %s24 = sadd.s32 %s17, 1
      %s25 = ssub.s32 %s17, %s24
      %p26 = scmp.eq.s32.totalorder %s25, 0
      %s28 = sadd.s32 %s27, 1
      %s29 = scalar_select %p26, %s27, %s28
      %p32 = pneg %p26
      %p33 = scmp.eq.s32.totalorder %s17, 1
      %p34 = por %p32, %p33
      %p35 = scmp.ne.s32.totalorder %s27, %s30
      %p36 = scmp.eq.s32.totalorder %s17, 0
      %p37 = por %p35, %p36
      %p38 = scmp.ne.s32.totalorder %s27, %s30
      %p39 = scmp.eq.s32.totalorder %s22, 1
      %p40 = por %p38, %p39
      %p41 = scmp.ne.s32.totalorder %s30, %s31
      %p42 = scmp.eq.s32.totalorder %s22, 0
      %p43 = por %p41, %p42
      %p44 = scmp.ne.s32.totalorder %s30, %s31
      %p45 = scmp.eq.s32.totalorder %s23, 1
      %p46 = por %p44, %p45
      %p48 = scmp.ne.s32.totalorder %s31, %s47
      %p49 = scmp.eq.s32.totalorder %s23, 0
      %p50 = por %p48, %p49
      %s52 = sadd.s32 %s51, 1
      %p55 = scmp.eq.s32.totalorder %s17, 1
      %p56 = scmp.ne.s32.totalorder %s51, %s53
      %p57 = scmp.eq.s32.totalorder %s17, 0
      %p58 = por %p56, %p57
      %p59 = scmp.ne.s32.totalorder %s51, %s53
      %p60 = scmp.eq.s32.totalorder %s22, 1
      %p61 = por %p59, %p60
      %p62 = scmp.ne.s32.totalorder %s53, %s54
      %p63 = scmp.eq.s32.totalorder %s22, 0
      %p64 = por %p62, %p63
      %p65 = scmp.ne.s32.totalorder %s53, %s54
      %p66 = scmp.eq.s32.totalorder %s23, 1
      %p67 = por %p65, %p66
      %p69 = scmp.ne.s32.totalorder %s54, %s68
      %p70 = scmp.eq.s32.totalorder %s23, 0
      %p71 = por %p69, %p70
      %s73 = sadd.s32 %s72, 1
      %p76 = scmp.eq.s32.totalorder %s17, 1
      %p77 = scmp.ne.s32.totalorder %s72, %s74
      %p78 = scmp.eq.s32.totalorder %s17, 0
      %p79 = por %p77, %p78
      %p80 = scmp.ne.s32.totalorder %s72, %s74
      %p81 = scmp.eq.s32.totalorder %s22, 1
      %p82 = por %p80, %p81
      %p83 = scmp.ne.s32.totalorder %s74, %s75
      %p84 = scmp.eq.s32.totalorder %s22, 0
      %p85 = por %p83, %p84
      %p86 = scmp.ne.s32.totalorder %s74, %s75
      %p87 = scmp.eq.s32.totalorder %s23, 1
      %p88 = por %p86, %p87
      %p90 = scmp.ne.s32.totalorder %s75, %s89
      %p91 = scmp.eq.s32.totalorder %s23, 0
      %p92 = por %p90, %p91
      %s94 = sadd.s32 %s93, 1
      %p97 = scmp.eq.s32.totalorder %s17, 1
      %p98 = scmp.ne.s32.totalorder %s93, %s95
      %p99 = scmp.eq.s32.totalorder %s17, 0
      %p100 = por %p98, %p99
      %p101 = scmp.ne.s32.totalorder %s93, %s95
      %p102 = scmp.eq.s32.totalorder %s22, 1
      %p103 = por %p101, %p102
      %p104 = scmp.ne.s32.totalorder %s95, %s96
      %p105 = scmp.eq.s32.totalorder %s22, 0
      %p106 = por %p104, %p105
      %p107 = scmp.ne.s32.totalorder %s95, %s96
      %p108 = scmp.eq.s32.totalorder %s23, 1
      %p109 = por %p107, %p108
      %p111 = scmp.ne.s32.totalorder %s96, %s110
      %p112 = scmp.eq.s32.totalorder %s23, 0
      %p113 = por %p111, %p112
      %s115 = sadd.s32 %s114, 1
      %p118 = scmp.eq.s32.totalorder %s17, 1
      %p119 = scmp.ne.s32.totalorder %s114, %s116
      %p120 = scmp.eq.s32.totalorder %s17, 0
      %p121 = por %p119, %p120
      %p122 = scmp.ne.s32.totalorder %s114, %s116
      %p123 = scmp.eq.s32.totalorder %s22, 1
      %p124 = por %p122, %p123
      %p125 = scmp.ne.s32.totalorder %s116, %s117
      %p126 = scmp.eq.s32.totalorder %s22, 0
      %p127 = por %p125, %p126
      %p128 = scmp.ne.s32.totalorder %s116, %s117
      %p129 = scmp.eq.s32.totalorder %s23, 1
      %p130 = por %p128, %p129
      %p132 = scmp.ne.s32.totalorder %s117, %s131
      %p133 = scmp.eq.s32.totalorder %s23, 0
      %p134 = por %p132, %p133
      %s135 = ssub.s32 %s17, %s24
      %p136 = scmp.eq.s32.totalorder %s135, 0
      %s138 = sadd.s32 %s137, 1
      %s139 = scalar_select %p136, %s137, %s138
      %p142 = pneg %p136
      %p143 = scmp.eq.s32.totalorder %s17, 1
      %p144 = por %p142, %p143
      %p145 = scmp.ne.s32.totalorder %s137, %s140
      %p146 = scmp.eq.s32.totalorder %s17, 0
      %p147 = por %p145, %p146
      %p148 = scmp.ne.s32.totalorder %s137, %s140
      %p149 = scmp.eq.s32.totalorder %s22, 1
      %p150 = por %p148, %p149
      %p151 = scmp.ne.s32.totalorder %s140, %s141
      %p152 = scmp.eq.s32.totalorder %s22, 0
      %p153 = por %p151, %p152
      %p154 = scmp.ne.s32.totalorder %s140, %s141
      %p155 = scmp.eq.s32.totalorder %s23, 1
      %p156 = por %p154, %p155
      %p158 = scmp.ne.s32.totalorder %s141, %s157
      %p159 = scmp.eq.s32.totalorder %s23, 0
      %p160 = por %p158, %p159
      %p161 = scmp.le.s32.totalorder 1, %s17
      %p162 = scmp.lt.s32.totalorder %s17, 3
      %p163 = pnand %p161, %p162
      %p164 = pneg %p163
      // Predicated region
      $region9: #{tpu_custom_call.1} parent=5 // pred_check
        _
      $region10: #{tpu_custom_call.1} parent=5 // pred_check_branch
        %166 = sbr.rel (%p163) target = $region12
      $region11: #{tpu_custom_call.1} parent=5 // pred_region
        %s167 = ssub.s32 %s17, 1
        // Predicated region
        $region13: #{tpu_custom_call.1} parent=11 // pred_check
          %p168 = pneg %p64
        $region14: #{tpu_custom_call.1} parent=11 // pred_check_branch
          %170 = sbr.rel (%p168) target = $region16
        $region15: #{tpu_custom_call.1} parent=11 // pred_region
          _
        $region16: #{tpu_custom_call.1} parent=11 // pred_fallthru
          _
        // Predicated region
        $region17: #{tpu_custom_call.1} parent=11 // pred_check
          %p171 = pneg %p85
        $region18: #{tpu_custom_call.1} parent=11 // pred_check_branch
          %173 = sbr.rel (%p171) target = $region20
        $region19: #{tpu_custom_call.1} parent=11 // pred_region
          _
        $region20: #{tpu_custom_call.1} parent=11 // pred_fallthru
          _
        // Predicated region
        $region21: #{tpu_custom_call.1} parent=11 // pred_check
          %p174 = pneg %p106
        $region22: #{tpu_custom_call.1} parent=11 // pred_check_branch
          %176 = sbr.rel (%p174) target = $region24
        $region23: #{tpu_custom_call.1} parent=11 // pred_region
          _
        $region24: #{tpu_custom_call.1} parent=11 // pred_fallthru
          _
        // Predicated region
        $region25: #{tpu_custom_call.1} parent=11 // pred_check
          %p177 = pneg %p127
        $region26: #{tpu_custom_call.1} parent=11 // pred_check_branch
          %179 = sbr.rel (%p177) target = $region28
        $region27: #{tpu_custom_call.1} parent=11 // pred_region
          _
        $region28: #{tpu_custom_call.1} parent=11 // pred_fallthru
          _
      $region12: #{tpu_custom_call.1} parent=5 // pred_fallthru
        _
      %p180 = scmp.lt.s32.totalorder %s17, 2
      // Predicated region
      $region29: #{tpu_custom_call.1} parent=5 // pred_check
        %p181 = pneg %p180
      $region30: #{tpu_custom_call.1} parent=5 // pred_check_branch
        %183 = sbr.rel (%p181) target = $region32
      $region31: #{tpu_custom_call.1} parent=5 // pred_region
        // Predicated region
        $region33: #{tpu_custom_call.1} parent=31 // pred_check
          %p184 = pneg %p37
        $region34: #{tpu_custom_call.1} parent=31 // pred_check_branch
          %186 = sbr.rel (%p184) target = $region36
        $region35: #{tpu_custom_call.1} parent=31 // pred_region
          %s187 = sand.u32 %s27, 1
          %s188 = scalar_lea.sflag [#allocation3], %s187
          %s189 = sand.u32 %s27, 1
          %s190 = smul.addr %s189, 128
          %s191 = scalar_lea.vmem [#allocation2], %s190
          %s192 = smul.u32 4, %s17
          %s194 = ssub.s32 2048, 2048
          %195 = vsyncadd %s188, %s194
          %s196 = smul.addr %s192, 128
          %s197 = scalar_lea.hbm %s0, %s196
          %s198 = sshll.u32 %s191, 4
          %s199 = int_to_ptr.vmem [resolvable:$true] %s198
          %204 = dma.hbm_to_vmem [thread:$0]  %s197, 2048, %s199, %s188, 1024, 512, 32
        $region36: #{tpu_custom_call.1} parent=31 // pred_fallthru
          _
      $region32: #{tpu_custom_call.1} parent=5 // pred_fallthru
        _
      %p205 = scmp.le.s32.totalorder 1, %s17
      %p206 = scmp.lt.s32.totalorder %s17, 3
      %p207 = pnand %p205, %p206
      %p208 = pneg %p207
      // Predicated region
      $region37: #{tpu_custom_call.1} parent=5 // pred_check
        _
      $region38: #{tpu_custom_call.1} parent=5 // pred_check_branch
        %210 = sbr.rel (%p207) target = $region40
      $region39: #{tpu_custom_call.1} parent=5 // pred_region
        %s211 = ssub.s32 %s17, 1
        %s212 = sand.u32 %s30, 1
        %s213 = scalar_lea.sflag [#allocation3], %s212
        %s214 = sand.u32 %s30, 1
        %s215 = smul.addr %s214, 128
        %s216 = scalar_lea.vmem [#allocation2], %s215
        // Predicated region
        $region41: #{tpu_custom_call.1} parent=39 // pred_check
          %p217 = pneg %p43
        $region42: #{tpu_custom_call.1} parent=39 // pred_check_branch
          %219 = sbr.rel (%p217) target = $region44
        $region43: #{tpu_custom_call.1} parent=39 // pred_region
          %220 = dma.done %s213, 2048
        $region44: #{tpu_custom_call.1} parent=39 // pred_fallthru
          _
        %s221 = sand.u32 %s30, 1
        %s222 = scalar_lea.sflag [#allocation3], %s221
        %s223 = sand.u32 %s30, 1
        %s224 = smul.addr %s223, 128
        %s225 = scalar_lea.vmem [#allocation2], %s224
        %p226 = pneg %p43
        %p227 = pneg %p40
        %p228 = pneg %p64
        %p229 = pneg %p61
        %p230 = pneg %p85
        %p231 = pneg %p82
        %p232 = pneg %p106
        %p233 = pneg %p103
        %p234 = pneg %p127
        %p235 = pneg %p124
        %p236 = pneg %p153
        %p237 = pneg %p150
        %s238 = sand.u32 %s140, 1
        %s239 = scalar_lea.sflag [#allocation4], %s238
        %s240 = sand.u32 %s140, 1
        %s241 = smul.addr %s240, 256
        %s242 = scalar_lea.vmem [#allocation5], %s241
        %s243 = smul.u32 4, %s22
        %s244 = smul.u32 4, %s22
        %v246 = vlaneseq
        %v247 = vand.u32 %v246, 127
        %v248 = vadd.s32 %v247, 128
        %v249 = vadd.s32 %v247, 256
        %v250 = vadd.s32 %v247, 384
        %vm251 = vcmp.lt.s32.totalorder %v247, 0
        %v252 = vsub.s32 0, %v247
        %v253 = vsel %vm251, %v252, %v247
        %v254 = vshrl.u32 %v253, 8
        %v255 = vand.u32 %v253, 255
        %v256 = vsub.s32 0, %v255
        %v257 = vsel %vm251, %v256, %v255
        %vm258 = vcmp.lt.s32.totalorder %v248, 0
        %v259 = vsub.s32 0, %v248
        %v260 = vsel %vm258, %v259, %v248
        %v261 = vshrl.u32 %v260, 8
        %v262 = vand.u32 %v260, 255
        %v263 = vsub.s32 0, %v262
        %v264 = vsel %vm258, %v263, %v262
        %vm265 = vcmp.lt.s32.totalorder %v249, 0
        %v266 = vsub.s32 0, %v249
        %v267 = vsel %vm265, %v266, %v249
        %v268 = vshrl.u32 %v267, 8
        %v269 = vand.u32 %v267, 255
        %v270 = vsub.s32 0, %v269
        %v271 = vsel %vm265, %v270, %v269
        %vm272 = vcmp.lt.s32.totalorder %v250, 0
        %v273 = vsub.s32 0, %v250
        %v274 = vsel %vm272, %v273, %v250
        %v275 = vshrl.u32 %v274, 8
        %v276 = vand.u32 %v274, 255
        %v277 = vsub.s32 0, %v276
        %v278 = vsel %vm272, %v277, %v276
        %vm279 = vcmp.ne.s32.totalorder %v257, 0
        %vm280 = vcmp.ne.s32.totalorder %v264, 0
        %vm281 = vcmp.ne.s32.totalorder %v271, 0
        %vm282 = vcmp.ne.s32.totalorder %v278, 0
        %vm283 = vcmp.lt.s32.totalorder %v257, 0
        %vm284 = vcmp.lt.s32.totalorder %v264, 0
        %vm285 = vcmp.lt.s32.totalorder %v271, 0
        %vm286 = vcmp.lt.s32.totalorder %v278, 0
        %vm287 = vmand %vm283, %vm279
        %vm288 = vmand %vm284, %vm280
        %vm289 = vmand %vm285, %vm281
        %vm290 = vmand %vm286, %vm282
        %v291 = vadd.s32 %v257, 256
        %v292 = vadd.s32 %v264, 256
        %v293 = vadd.s32 %v271, 256
        %v294 = vadd.s32 %v278, 256
        %v295 = vsel %vm287, %v291, %v257
        %v296 = vsel %vm288, %v292, %v264
        %v297 = vsel %vm289, %v293, %v271
        %v298 = vsel %vm290, %v294, %v278
        %vm299 = vcmp.ge.s32.totalorder %v295, 1
        %vm300 = vcmp.ge.s32.totalorder %v296, 1
        %vm301 = vcmp.ge.s32.totalorder %v297, 1
        %vm302 = vcmp.ge.s32.totalorder %v298, 1
        %vm303 = vcmp.lt.s32.totalorder %v295, 257
        %vm304 = vcmp.lt.s32.totalorder %v296, 257
        %vm305 = vcmp.lt.s32.totalorder %v297, 257
        %vm306 = vcmp.lt.s32.totalorder %v298, 257
        %vm307 = vmand %vm299, %vm303
        %vm308 = vmand %vm300, %vm304
        %vm309 = vmand %vm301, %vm305
        %vm310 = vmand %vm302, %vm306
        %vm311 = vcmp.ge.s32.totalorder %v295, 4294967295
        %vm312 = vcmp.ge.s32.totalorder %v296, 4294967295
        %vm313 = vcmp.ge.s32.totalorder %v297, 4294967295
        %vm314 = vcmp.ge.s32.totalorder %v298, 4294967295
        %vm315 = vcmp.lt.s32.totalorder %v295, 255
        %vm316 = vcmp.lt.s32.totalorder %v296, 255
        %vm317 = vcmp.lt.s32.totalorder %v297, 255
        %vm318 = vcmp.lt.s32.totalorder %v298, 255
        %vm319 = vmand %vm311, %vm315
        %vm320 = vmand %vm312, %vm316
        %vm321 = vmand %vm313, %vm317
        %vm322 = vmand %vm314, %vm318
        %v323 = vld [vmem:[%s216] sm:$0xff]
        %v324 = vld [vmem:[%s216 + $0x8] sm:$0xff]
        %v325 = vld [vmem:[%s216 + $0x10] sm:$0xff]
        %v326 = vld [vmem:[%s216 + $0x18] sm:$0xff]
        %v327 = vld [vmem:[%s216 + $0x20] sm:$0xff]
        %v328 = vld [vmem:[%s216 + $0x28] sm:$0xff]
        %v329 = vld [vmem:[%s216 + $0x30] sm:$0xff]
        %v330 = vld [vmem:[%s216 + $0x38] sm:$0xff]
        %v331 = vld [vmem:[%s216 + $0x40] sm:$0xff]
        %v332 = vld [vmem:[%s216 + $0x48] sm:$0xff]
        %v333 = vld [vmem:[%s216 + $0x50] sm:$0xff]
        %v334 = vld [vmem:[%s216 + $0x58] sm:$0xff]
        %v335 = vld [vmem:[%s216 + $0x60] sm:$0xff]
        %v336 = vld [vmem:[%s216 + $0x68] sm:$0xff]
        %v337 = vld [vmem:[%s216 + $0x70] sm:$0xff]
        %v338 = vld [vmem:[%s216 + $0x78] sm:$0xff]
        %v339 = vld [vmem:[%s1] sm:$0xf]
        %v340 = vld [vmem:[%s1 + $0x4] sm:$0xf]
        %v341 = vld [vmem:[%s1 + $0x8] sm:$0xf]
        %v342 = vld [vmem:[%s1 + $0xc] sm:$0xf]
        %v343 = vld [vmem:[%s1 + $0x10] sm:$0xf]
        %v344 = vld [vmem:[%s1 + $0x14] sm:$0xf]
        %v345 = vld [vmem:[%s1 + $0x18] sm:$0xf]
        %v346 = vld [vmem:[%s1 + $0x1c] sm:$0xf]
        %347 = vrot.lane.b32.xlu0 %v323, 1
        %v348 = vpop.permute.xlu0 %347
        %349 = vrot.lane.b32.xlu0 %v327, 1
        %v350 = vpop.permute.xlu0 %349
        %351 = vrot.lane.b32.xlu0 %v331, 1
        %v352 = vpop.permute.xlu0 %351
        %353 = vrot.lane.b32.xlu0 %v335, 1
        %v354 = vpop.permute.xlu0 %353
        %355 = vrot.lane.b32.xlu0 %v324, 1
        %v356 = vpop.permute.xlu0 %355
        %357 = vrot.lane.b32.xlu0 %v328, 1
        %v358 = vpop.permute.xlu0 %357
        %359 = vrot.lane.b32.xlu0 %v332, 1
        %v360 = vpop.permute.xlu0 %359
        %361 = vrot.lane.b32.xlu0 %v336, 1
        %v362 = vpop.permute.xlu0 %361
        %363 = vrot.lane.b32.xlu0 %v325, 1
        %v364 = vpop.permute.xlu0 %363
        %365 = vrot.lane.b32.xlu0 %v329, 1
        %v366 = vpop.permute.xlu0 %365
        %367 = vrot.lane.b32.xlu0 %v333, 1
        %v368 = vpop.permute.xlu0 %367
        %369 = vrot.lane.b32.xlu0 %v337, 1
        %v370 = vpop.permute.xlu0 %369
        %371 = vrot.lane.b32.xlu0 %v326, 1
        %v372 = vpop.permute.xlu0 %371
        %373 = vrot.lane.b32.xlu0 %v330, 1
        %v374 = vpop.permute.xlu0 %373
        %375 = vrot.lane.b32.xlu0 %v334, 1
        %v376 = vpop.permute.xlu0 %375
        %377 = vrot.lane.b32.xlu0 %v338, 1
        %v378 = vpop.permute.xlu0 %377
        %vm379 = vcmp.lt.s32.totalorder %v247, 1
        %v380 = vsel %vm379, %v364, %v372
        %v381 = vsel %vm379, %v366, %v374
        %v382 = vsel %vm379, %v368, %v376
        %v383 = vsel %vm379, %v370, %v378
        %v384 = vsel %vm379, %v356, %v364
        %v385 = vsel %vm379, %v358, %v366
        %v386 = vsel %vm379, %v360, %v368
        %v387 = vsel %vm379, %v362, %v370
        %v388 = vsel %vm379, %v348, %v356
        %v389 = vsel %vm379, %v350, %v358
        %v390 = vsel %vm379, %v352, %v360
        %v391 = vsel %vm379, %v354, %v362
        %v392 = vsel %vm379, %v372, %v348
        %v393 = vsel %vm379, %v374, %v350
        %v394 = vsel %vm379, %v376, %v352
        %v395 = vsel %vm379, %v378, %v354
        %v396 = vsel %vm307, 1, 0
        %v397 = vsel %vm308, 1, 0
        %v398 = vsel %vm309, 1, 0
        %v399 = vsel %vm310, 1, 0
        %vm400 = vcmp.eq.s32.totalorder %v396, 1
        %vm401 = vcmp.eq.s32.totalorder %v397, 1
        %vm402 = vcmp.eq.s32.totalorder %v398, 1
        %vm403 = vcmp.eq.s32.totalorder %v399, 1
        %v404 = vsel %vm400, %v392, 0.0
        %v405 = vsel %vm401, %v388, 0.0
        %v406 = vsel %vm402, %v384, 0.0
        %v407 = vsel %vm403, %v380, 0.0
        %v408 = vsel %vm400, %v393, 0.0
        %v409 = vsel %vm401, %v389, 0.0
        %v410 = vsel %vm402, %v385, 0.0
        %v411 = vsel %vm403, %v381, 0.0
        %v412 = vsel %vm400, %v394, 0.0
        %v413 = vsel %vm401, %v390, 0.0
        %v414 = vsel %vm402, %v386, 0.0
        %v415 = vsel %vm403, %v382, 0.0
        %v416 = vsel %vm400, %v395, 0.0
        %v417 = vsel %vm401, %v391, 0.0
        %v418 = vsel %vm402, %v387, 0.0
        %v419 = vsel %vm403, %v383, 0.0
        %420 = vrot.lane.b32.xlu0 %v323, 127
        %v421 = vpop.permute.xlu0 %420
        %422 = vrot.lane.b32.xlu0 %v327, 127
        %v423 = vpop.permute.xlu0 %422
        %424 = vrot.lane.b32.xlu0 %v331, 127
        %v425 = vpop.permute.xlu0 %424
        %426 = vrot.lane.b32.xlu0 %v335, 127
        %v427 = vpop.permute.xlu0 %426
        %428 = vrot.lane.b32.xlu0 %v324, 127
        %v429 = vpop.permute.xlu0 %428
        %430 = vrot.lane.b32.xlu0 %v328, 127
        %v431 = vpop.permute.xlu0 %430
        %432 = vrot.lane.b32.xlu0 %v332, 127
        %v433 = vpop.permute.xlu0 %432
        %434 = vrot.lane.b32.xlu0 %v336, 127
        %v435 = vpop.permute.xlu0 %434
        %436 = vrot.lane.b32.xlu0 %v325, 127
        %v437 = vpop.permute.xlu0 %436
        %438 = vrot.lane.b32.xlu0 %v329, 127
        %v439 = vpop.permute.xlu0 %438
        %440 = vrot.lane.b32.xlu0 %v333, 127
        %v441 = vpop.permute.xlu0 %440
        %442 = vrot.lane.b32.xlu0 %v337, 127
        %v443 = vpop.permute.xlu0 %442
        %444 = vrot.lane.b32.xlu0 %v326, 127
        %v445 = vpop.permute.xlu0 %444
        %446 = vrot.lane.b32.xlu0 %v330, 127
        %v447 = vpop.permute.xlu0 %446
        %448 = vrot.lane.b32.xlu0 %v334, 127
        %v449 = vpop.permute.xlu0 %448
        %450 = vrot.lane.b32.xlu0 %v338, 127
        %v451 = vpop.permute.xlu0 %450
        %vm452 = vcmp.lt.s32.totalorder %v247, 127
        %v453 = vsel %vm452, %v437, %v445
        %v454 = vsel %vm452, %v439, %v447
        %v455 = vsel %vm452, %v441, %v449
        %v456 = vsel %vm452, %v443, %v451
        %v457 = vsel %vm452, %v429, %v437
        %v458 = vsel %vm452, %v431, %v439
        %v459 = vsel %vm452, %v433, %v441
        %v460 = vsel %vm452, %v435, %v443
        %v461 = vsel %vm452, %v421, %v429
        %v462 = vsel %vm452, %v423, %v431
        %v463 = vsel %vm452, %v425, %v433
        %v464 = vsel %vm452, %v427, %v435
        %v465 = vsel %vm452, %v445, %v421
        %v466 = vsel %vm452, %v447, %v423
        %v467 = vsel %vm452, %v449, %v425
        %v468 = vsel %vm452, %v451, %v427
        %v469 = vsel %vm319, 1, 0
        %v470 = vsel %vm320, 1, 0
        %v471 = vsel %vm321, 1, 0
        %v472 = vsel %vm322, 1, 0
        %vm473 = vcmp.eq.s32.totalorder %v469, 1
        %vm474 = vcmp.eq.s32.totalorder %v470, 1
        %vm475 = vcmp.eq.s32.totalorder %v471, 1
        %vm476 = vcmp.eq.s32.totalorder %v472, 1
        %v477 = vsel %vm473, %v461, 0.0
        %v478 = vsel %vm474, %v457, 0.0
        %v479 = vsel %vm475, %v453, 0.0
        %v480 = vsel %vm476, %v465, 0.0
        %v481 = vsel %vm473, %v462, 0.0
        %v482 = vsel %vm474, %v458, 0.0
        %v483 = vsel %vm475, %v454, 0.0
        %v484 = vsel %vm476, %v466, 0.0
        %v485 = vsel %vm473, %v463, 0.0
        %v486 = vsel %vm474, %v459, 0.0
        %v487 = vsel %vm475, %v455, 0.0
        %v488 = vsel %vm476, %v467, 0.0
        %v489 = vsel %vm473, %v464, 0.0
        %v490 = vsel %vm474, %v460, 0.0
        %v491 = vsel %vm475, %v456, 0.0
        %v492 = vsel %vm476, %v468, 0.0
        %v493 = vpack.c.bf16 %v408, %v404
        %v494 = vpack.c.bf16 %v409, %v405
        %v495 = vpack.c.bf16 %v410, %v406
        %v496 = vpack.c.bf16 %v411, %v407
        %v497 = vpack.c.bf16 %v416, %v412
        %v498 = vpack.c.bf16 %v417, %v413
        %v499 = vpack.c.bf16 %v418, %v414
        %v500 = vpack.c.bf16 %v419, %v415
        %v501 = vpack.c.bf16 %v327, %v323
        %v502 = vpack.c.bf16 %v328, %v324
        %v503 = vpack.c.bf16 %v329, %v325
        %v504 = vpack.c.bf16 %v330, %v326
        %v505 = vpack.c.bf16 %v335, %v331
        %v506 = vpack.c.bf16 %v336, %v332
        %v507 = vpack.c.bf16 %v337, %v333
        %v508 = vpack.c.bf16 %v338, %v334
        %v509 = vpack.c.bf16 %v481, %v477
        %v510 = vpack.c.bf16 %v482, %v478
        %v511 = vpack.c.bf16 %v483, %v479
        %v512 = vpack.c.bf16 %v484, %v480
        %v513 = vpack.c.bf16 %v489, %v485
        %v514 = vpack.c.bf16 %v490, %v486
        %v515 = vpack.c.bf16 %v491, %v487
        %v516 = vpack.c.bf16 %v492, %v488
        %v517 = vld [vmem:[%s3] sm:$0xff]
        %v518 = vld [vmem:[%s3 + $0x8] sm:$0xff]
        %v519 = vld [vmem:[%s3 + $0x10] sm:$0xff]
        %v520 = vld [vmem:[%s3 + $0x18] sm:$0xff]
        %v521 = vld [vmem:[%s3 + $0x20] sm:$0xff]
        %v522 = vld [vmem:[%s3 + $0x28] sm:$0xff]
        %v523 = vld [vmem:[%s3 + $0x30] sm:$0xff]
        %v524 = vld [vmem:[%s3 + $0x38] sm:$0xff]
        %526 = vset.pattern.permute.xlu0 0
        %527 = vperm.xlu0 %526, %v517
        %v528 = vpop.permute.xlu0 %527
        %531 = vset.pattern.permute.xlu0 0
        %532 = vperm.xlu0 %531, %v518
        %v533 = vpop.permute.xlu0 %532
        %536 = vset.pattern.permute.xlu0 0
        %537 = vperm.xlu0 %536, %v519
        %v538 = vpop.permute.xlu0 %537
        %541 = vset.pattern.permute.xlu0 0
        %542 = vperm.xlu0 %541, %v520
        %v543 = vpop.permute.xlu0 %542
        %546 = vset.pattern.permute.xlu0 0
        %547 = vperm.xlu0 %546, %v521
        %v548 = vpop.permute.xlu0 %547
        %551 = vset.pattern.permute.xlu0 0
        %552 = vperm.xlu0 %551, %v522
        %v553 = vpop.permute.xlu0 %552
        %556 = vset.pattern.permute.xlu0 0
        %557 = vperm.xlu0 %556, %v523
        %v558 = vpop.permute.xlu0 %557
        %561 = vset.pattern.permute.xlu0 0
        %562 = vperm.xlu0 %561, %v524
        %v563 = vpop.permute.xlu0 %562
        %v573 = vunpack.c.l.b16 %v339
        %v574 = vunpack.c.l.b16 %v340
        %v575 = vunpack.c.l.b16 %v341
        %v576 = vunpack.c.l.b16 %v342
        %v577 = vunpack.c.l.b16 %v343
        %v578 = vunpack.c.l.b16 %v344
        %v579 = vunpack.c.l.b16 %v345
        %v580 = vunpack.c.l.b16 %v346
        %v581 = vpack.c.b16 %v574, %v573
        %v582 = vpack.c.b16 %v576, %v575
        %v583 = vpack.c.b16 %v578, %v577
        %v584 = vpack.c.b16 %v580, %v579
        %vm585 = vcmask 785408
        %v587 = vsel %vm585, %v581, 0
        %v590 = vsel %vm585, %v582, 0
        %v593 = vsel %vm585, %v583, 0
        %v596 = vsel %vm585, %v584, 0
        %598 = vmatprep.subr.bf16.mxu0 %v494
        %599 = vmatpush1.bf16.msra.mxu0 %v493
        %600 = vmatprep.subr.bf16.mxu0 %v498
        %601 = vmatpush1.bf16.msra.mxu0 %v497
        %602 = vmatprep.subr.bf16.mxu0 %v502
        %603 = vmatpush1.bf16.msra.mxu0 %v501
        %604 = vmatprep.subr.bf16.mxu0 %v506
        %605 = vmatpush1.bf16.msra.mxu0 %v505
        %606 = vmatprep.subr.bf16.mxu0 %v510
        %607 = vmatpush1.bf16.msra.mxu0 %v509
        %608 = vmatprep.subr.bf16.mxu0 %v514
        %609 = vmatpush1.bf16.msra.mxu0 %v513
        %610 = vmatprep.subr.bf16.mxu0 0
        %611 = vmatpush1.bf16.msra.mxu0 0
        %612 = vmatprep.subr.bf16.mxu0 0
        %613 = vmatpush1.bf16.msra.mxu0 0
        %614 = vmatprep.subr.bf16.mxu0 0
        %615 = vmatpush1.bf16.msra.mxu0 0
        %616 = vmatprep.subr.bf16.mxu0 0
        %617 = vmatpush1.bf16.msra.mxu0 0
        %618 = vmatprep.subr.bf16.mxu0 0
        %619 = vmatpush1.bf16.msra.mxu0 0
        %620 = vmatprep.subr.bf16.mxu0 0
        %621 = vmatpush1.bf16.msra.mxu0 0
        %622 = vmatprep.subr.bf16.mxu0 0
        %623 = vmatpush1.bf16.msra.mxu0 0
        %624 = vmatprep.subr.bf16.mxu0 0
        %625 = vmatpush1.bf16.msra.mxu0 0
        %626 = vmatprep.subr.bf16.mxu0 0
        %627 = vmatpush1.bf16.msra.mxu0 0
        %628 = vmatprep.subr.bf16.mxu0 0
        %629 = vmatpush1.bf16.msra.mxu0 0
        %630 = vmatprep.mubr.bf16.mxu0 0
        %631 = vmatmul.mubr.bf16.gmra.mrb[0].mxu0 %v587
        %v632 = vpop.f32.mrb[0].mxu0
        %v633 = vadd.f32 %v528, %v632
        %v634 = vpop.f32.mrb[0].mxu0
        %v635 = vadd.f32 %v528, %v634
        %v636 = vpop.f32.mrb[0].mxu0
        %v637 = vadd.f32 %v533, %v636
        %v638 = vpop.f32.mrb[0].mxu0
        %v639 = vadd.f32 %v533, %v638
        %640 = vmatprep.mubr.bf16.mxu0 0
        %641 = vmatmul.mubr.bf16.gmra.mrb[0].mxu0 %v590
        %v642 = vpop.f32.mrb[0].mxu0
        %v643 = vadd.f32 %v538, %v642
        %v644 = vpop.f32.mrb[0].mxu0
        %v645 = vadd.f32 %v538, %v644
        %v646 = vpop.f32.mrb[0].mxu0
        %v647 = vadd.f32 %v543, %v646
        %v648 = vpop.f32.mrb[0].mxu0
        %v649 = vadd.f32 %v543, %v648
        %650 = vmatprep.mubr.bf16.mxu0 0
        %651 = vmatmul.mubr.bf16.gmra.mrb[0].mxu0 %v593
        %v652 = vpop.f32.mrb[0].mxu0
        %v653 = vadd.f32 %v548, %v652
        %v654 = vpop.f32.mrb[0].mxu0
        %v655 = vadd.f32 %v548, %v654
        %v656 = vpop.f32.mrb[0].mxu0
        %v657 = vadd.f32 %v553, %v656
        %v658 = vpop.f32.mrb[0].mxu0
        %v659 = vadd.f32 %v553, %v658
        %660 = vmatprep.mubr.bf16.mxu0 0
        %661 = vmatmul.mubr.bf16.gmra.mrb[0].mxu0 %v596
        %v662 = vpop.f32.mrb[0].mxu0
        %v663 = vadd.f32 %v558, %v662
        %v664 = vpop.f32.mrb[0].mxu0
        %v665 = vadd.f32 %v558, %v664
        %v666 = vpop.f32.mrb[0].mxu0
        %v667 = vadd.f32 %v563, %v666
        %v668 = vpop.f32.mrb[0].mxu0
        %v669 = vadd.f32 %v563, %v668
        %670 = vdwg.mxu0
        %671 = vmatprep.subr.bf16.mxu0 %v496
        %672 = vmatpush1.bf16.msra.mxu0 %v495
        %673 = vmatprep.subr.bf16.mxu0 %v500
        %674 = vmatpush1.bf16.msra.mxu0 %v499
        %675 = vmatprep.subr.bf16.mxu0 %v504
        %676 = vmatpush1.bf16.msra.mxu0 %v503
        %677 = vmatprep.subr.bf16.mxu0 %v508
        %678 = vmatpush1.bf16.msra.mxu0 %v507
        %679 = vmatprep.subr.bf16.mxu0 %v512
        %680 = vmatpush1.bf16.msra.mxu0 %v511
        %681 = vmatprep.subr.bf16.mxu0 %v516
        %682 = vmatpush1.bf16.msra.mxu0 %v515
        %683 = vmatprep.subr.bf16.mxu0 0
        %684 = vmatpush1.bf16.msra.mxu0 0
        %685 = vmatprep.subr.bf16.mxu0 0
        %686 = vmatpush1.bf16.msra.mxu0 0
        %687 = vmatprep.subr.bf16.mxu0 0
        %688 = vmatpush1.bf16.msra.mxu0 0
        %689 = vmatprep.subr.bf16.mxu0 0
        %690 = vmatpush1.bf16.msra.mxu0 0
        %691 = vmatprep.subr.bf16.mxu0 0
        %692 = vmatpush1.bf16.msra.mxu0 0
        %693 = vmatprep.subr.bf16.mxu0 0
        %694 = vmatpush1.bf16.msra.mxu0 0
        %695 = vmatprep.subr.bf16.mxu0 0
        %696 = vmatpush1.bf16.msra.mxu0 0
        %697 = vmatprep.subr.bf16.mxu0 0
        %698 = vmatpush1.bf16.msra.mxu0 0
        %699 = vmatprep.subr.bf16.mxu0 0
        %700 = vmatpush1.bf16.msra.mxu0 0
        %701 = vmatprep.subr.bf16.mxu0 0
        %702 = vmatpush1.bf16.msra.mxu0 0
        %703 = vmatprep.mubr.bf16.mxu0 0
        %704 = vmatmul.mubr.bf16.gmra.mrb[0].mxu0 %v587
        %v705 = vpop.f32.mrb[0].mxu0
        %v706 = vadd.f32 %v528, %v705
        %v707 = vpop.f32.mrb[0].mxu0
        %v708 = vadd.f32 %v528, %v707
        %v709 = vpop.f32.mrb[0].mxu0
        %v710 = vadd.f32 %v533, %v709
        %v711 = vpop.f32.mrb[0].mxu0
        %v712 = vadd.f32 %v533, %v711
        %713 = vmatprep.mubr.bf16.mxu0 0
        %714 = vmatmul.mubr.bf16.gmra.mrb[0].mxu0 %v590
        %v715 = vpop.f32.mrb[0].mxu0
        %v716 = vadd.f32 %v538, %v715
        %v717 = vpop.f32.mrb[0].mxu0
        %v718 = vadd.f32 %v538, %v717
        %v719 = vpop.f32.mrb[0].mxu0
        %v720 = vadd.f32 %v543, %v719
        %v721 = vpop.f32.mrb[0].mxu0
        %v722 = vadd.f32 %v543, %v721
        %723 = vmatprep.mubr.bf16.mxu0 0
        %724 = vmatmul.mubr.bf16.gmra.mrb[0].mxu0 %v593
        %v725 = vpop.f32.mrb[0].mxu0
        %v726 = vadd.f32 %v548, %v725
        %v727 = vpop.f32.mrb[0].mxu0
        %v728 = vadd.f32 %v548, %v727
        %v729 = vpop.f32.mrb[0].mxu0
        %v730 = vadd.f32 %v553, %v729
        %v731 = vpop.f32.mrb[0].mxu0
        %v732 = vadd.f32 %v553, %v731
        %733 = vmatprep.mubr.bf16.mxu0 0
        %734 = vmatmul.mubr.bf16.gmra.mrb[0].mxu0 %v596
        %v735 = vpop.f32.mrb[0].mxu0
        %v736 = vadd.f32 %v558, %v735
        %v737 = vpop.f32.mrb[0].mxu0
        %v738 = vadd.f32 %v558, %v737
        %v739 = vpop.f32.mrb[0].mxu0
        %v740 = vadd.f32 %v563, %v739
        %v741 = vpop.f32.mrb[0].mxu0
        %v742 = vadd.f32 %v563, %v741
        %743 = vdwg.mxu0
        %v744 = vmax.f32 %v633, 0.0
        %v745 = vmax.f32 %v635, 0.0
        %v746 = vmax.f32 %v706, 0.0
        %v747 = vmax.f32 %v708, 0.0
        %v748 = vmax.f32 %v637, 0.0
        %v749 = vmax.f32 %v639, 0.0
        %v750 = vmax.f32 %v710, 0.0
        %v751 = vmax.f32 %v712, 0.0
        %v752 = vmax.f32 %v643, 0.0
        %v753 = vmax.f32 %v645, 0.0
        %v754 = vmax.f32 %v716, 0.0
        %v755 = vmax.f32 %v718, 0.0
        %v756 = vmax.f32 %v647, 0.0
        %v757 = vmax.f32 %v649, 0.0
        %v758 = vmax.f32 %v720, 0.0
        %v759 = vmax.f32 %v722, 0.0
        %v760 = vmax.f32 %v653, 0.0
        %v761 = vmax.f32 %v655, 0.0
        %v762 = vmax.f32 %v726, 0.0
        %v763 = vmax.f32 %v728, 0.0
        %v764 = vmax.f32 %v657, 0.0
        %v765 = vmax.f32 %v659, 0.0
        %v766 = vmax.f32 %v730, 0.0
        %v767 = vmax.f32 %v732, 0.0
        %v768 = vmax.f32 %v663, 0.0
        %v769 = vmax.f32 %v665, 0.0
        %v770 = vmax.f32 %v736, 0.0
        %v771 = vmax.f32 %v738, 0.0
        %v772 = vmax.f32 %v667, 0.0
        %v773 = vmax.f32 %v669, 0.0
        %v774 = vmax.f32 %v740, 0.0
        %v775 = vmax.f32 %v742, 0.0
        %v776 = vld [vmem:[%s2] sm:$0xff]
        %v777 = vld [vmem:[%s2 + $0x8] sm:$0xff]
        %v778 = vld [vmem:[%s2 + $0x10] sm:$0xff]
        %v779 = vld [vmem:[%s2 + $0x18] sm:$0xff]
        %v780 = vld [vmem:[%s2 + $0x20] sm:$0xff]
        %v781 = vld [vmem:[%s2 + $0x28] sm:$0xff]
        %v782 = vld [vmem:[%s2 + $0x30] sm:$0xff]
        %v783 = vld [vmem:[%s2 + $0x38] sm:$0xff]
        %784 = vrot.lane.b32.xlu0 %v744, 1
        %v785 = vpop.permute.xlu0 %784
        %786 = vrot.lane.b32.xlu0 %v748, 1
        %v787 = vpop.permute.xlu0 %786
        %788 = vrot.lane.b32.xlu0 %v752, 1
        %v789 = vpop.permute.xlu0 %788
        %790 = vrot.lane.b32.xlu0 %v756, 1
        %v791 = vpop.permute.xlu0 %790
        %792 = vrot.lane.b32.xlu0 %v760, 1
        %v793 = vpop.permute.xlu0 %792
        %794 = vrot.lane.b32.xlu0 %v764, 1
        %v795 = vpop.permute.xlu0 %794
        %796 = vrot.lane.b32.xlu0 %v768, 1
        %v797 = vpop.permute.xlu0 %796
        %798 = vrot.lane.b32.xlu0 %v772, 1
        %v799 = vpop.permute.xlu0 %798
        %800 = vrot.lane.b32.xlu0 %v745, 1
        %v801 = vpop.permute.xlu0 %800
        %802 = vrot.lane.b32.xlu0 %v749, 1
        %v803 = vpop.permute.xlu0 %802
        %804 = vrot.lane.b32.xlu0 %v753, 1
        %v805 = vpop.permute.xlu0 %804
        %806 = vrot.lane.b32.xlu0 %v757, 1
        %v807 = vpop.permute.xlu0 %806
        %808 = vrot.lane.b32.xlu0 %v761, 1
        %v809 = vpop.permute.xlu0 %808
        %810 = vrot.lane.b32.xlu0 %v765, 1
        %v811 = vpop.permute.xlu0 %810
        %812 = vrot.lane.b32.xlu0 %v769, 1
        %v813 = vpop.permute.xlu0 %812
        %814 = vrot.lane.b32.xlu0 %v773, 1
        %v815 = vpop.permute.xlu0 %814
        %816 = vrot.lane.b32.xlu0 %v746, 1
        %v817 = vpop.permute.xlu0 %816
        %818 = vrot.lane.b32.xlu0 %v750, 1
        %v819 = vpop.permute.xlu0 %818
        %820 = vrot.lane.b32.xlu0 %v754, 1
        %v821 = vpop.permute.xlu0 %820
        %822 = vrot.lane.b32.xlu0 %v758, 1
        %v823 = vpop.permute.xlu0 %822
        %824 = vrot.lane.b32.xlu0 %v762, 1
        %v825 = vpop.permute.xlu0 %824
        %826 = vrot.lane.b32.xlu0 %v766, 1
        %v827 = vpop.permute.xlu0 %826
        %828 = vrot.lane.b32.xlu0 %v770, 1
        %v829 = vpop.permute.xlu0 %828
        %830 = vrot.lane.b32.xlu0 %v774, 1
        %v831 = vpop.permute.xlu0 %830
        %832 = vrot.lane.b32.xlu0 %v747, 1
        %v833 = vpop.permute.xlu0 %832
        %834 = vrot.lane.b32.xlu0 %v751, 1
        %v835 = vpop.permute.xlu0 %834
        %836 = vrot.lane.b32.xlu0 %v755, 1
        %v837 = vpop.permute.xlu0 %836
        %838 = vrot.lane.b32.xlu0 %v759, 1
        %v839 = vpop.permute.xlu0 %838
        %840 = vrot.lane.b32.xlu0 %v763, 1
        %v841 = vpop.permute.xlu0 %840
        %842 = vrot.lane.b32.xlu0 %v767, 1
        %v843 = vpop.permute.xlu0 %842
        %844 = vrot.lane.b32.xlu0 %v771, 1
        %v845 = vpop.permute.xlu0 %844
        %846 = vrot.lane.b32.xlu0 %v775, 1
        %v847 = vpop.permute.xlu0 %846
        %v848 = vsel %vm379, %v817, %v833
        %v849 = vsel %vm379, %v819, %v835
        %v850 = vsel %vm379, %v821, %v837
        %v851 = vsel %vm379, %v823, %v839
        %v852 = vsel %vm379, %v825, %v841
        %v853 = vsel %vm379, %v827, %v843
        %v854 = vsel %vm379, %v829, %v845
        %v855 = vsel %vm379, %v831, %v847
        %v856 = vsel %vm379, %v801, %v817
        %v857 = vsel %vm379, %v803, %v819
        %v858 = vsel %vm379, %v805, %v821
        %v859 = vsel %vm379, %v807, %v823
        %v860 = vsel %vm379, %v809, %v825
        %v861 = vsel %vm379, %v811, %v827
        %v862 = vsel %vm379, %v813, %v829
        %v863 = vsel %vm379, %v815, %v831
        %v864 = vsel %vm379, %v785, %v801
        %v865 = vsel %vm379, %v787, %v803
        %v866 = vsel %vm379, %v789, %v805
        %v867 = vsel %vm379, %v791, %v807
        %v868 = vsel %vm379, %v793, %v809
        %v869 = vsel %vm379, %v795, %v811
        %v870 = vsel %vm379, %v797, %v813
        %v871 = vsel %vm379, %v799, %v815
        %v872 = vsel %vm379, %v833, %v785
        %v873 = vsel %vm379, %v835, %v787
        %v874 = vsel %vm379, %v837, %v789
        %v875 = vsel %vm379, %v839, %v791
        %v876 = vsel %vm379, %v841, %v793
        %v877 = vsel %vm379, %v843, %v795
        %v878 = vsel %vm379, %v845, %v797
        %v879 = vsel %vm379, %v847, %v799
        %v880 = vsel %vm400, %v872, 0.0
        %v881 = vsel %vm401, %v864, 0.0
        %v882 = vsel %vm402, %v856, 0.0
        %v883 = vsel %vm403, %v848, 0.0
        %v884 = vsel %vm400, %v873, 0.0
        %v885 = vsel %vm401, %v865, 0.0
        %v886 = vsel %vm402, %v857, 0.0
        %v887 = vsel %vm403, %v849, 0.0
        %v888 = vsel %vm400, %v874, 0.0
        %v889 = vsel %vm401, %v866, 0.0
        %v890 = vsel %vm402, %v858, 0.0
        %v891 = vsel %vm403, %v850, 0.0
        %v892 = vsel %vm400, %v875, 0.0
        %v893 = vsel %vm401, %v867, 0.0
        %v894 = vsel %vm402, %v859, 0.0
        %v895 = vsel %vm403, %v851, 0.0
        %v896 = vsel %vm400, %v876, 0.0
        %v897 = vsel %vm401, %v868, 0.0
        %v898 = vsel %vm402, %v860, 0.0
        %v899 = vsel %vm403, %v852, 0.0
        %v900 = vsel %vm400, %v877, 0.0
        %v901 = vsel %vm401, %v869, 0.0
        %v902 = vsel %vm402, %v861, 0.0
        %v903 = vsel %vm403, %v853, 0.0
        %v904 = vsel %vm400, %v878, 0.0
        %v905 = vsel %vm401, %v870, 0.0
        %v906 = vsel %vm402, %v862, 0.0
        %v907 = vsel %vm403, %v854, 0.0
        %v908 = vsel %vm400, %v879, 0.0
        %v909 = vsel %vm401, %v871, 0.0
        %v910 = vsel %vm402, %v863, 0.0
        %v911 = vsel %vm403, %v855, 0.0
        %912 = vrot.lane.b32.xlu0 %v744, 127
        %v913 = vpop.permute.xlu0 %912
        %914 = vrot.lane.b32.xlu0 %v748, 127
        %v915 = vpop.permute.xlu0 %914
        %916 = vrot.lane.b32.xlu0 %v752, 127
        %v917 = vpop.permute.xlu0 %916
        %918 = vrot.lane.b32.xlu0 %v756, 127
        %v919 = vpop.permute.xlu0 %918
        %920 = vrot.lane.b32.xlu0 %v760, 127
        %v921 = vpop.permute.xlu0 %920
        %922 = vrot.lane.b32.xlu0 %v764, 127
        %v923 = vpop.permute.xlu0 %922
        %924 = vrot.lane.b32.xlu0 %v768, 127
        %v925 = vpop.permute.xlu0 %924
        %926 = vrot.lane.b32.xlu0 %v772, 127
        %v927 = vpop.permute.xlu0 %926
        %928 = vrot.lane.b32.xlu0 %v745, 127
        %v929 = vpop.permute.xlu0 %928
        %930 = vrot.lane.b32.xlu0 %v749, 127
        %v931 = vpop.permute.xlu0 %930
        %932 = vrot.lane.b32.xlu0 %v753, 127
        %v933 = vpop.permute.xlu0 %932
        %934 = vrot.lane.b32.xlu0 %v757, 127
        %v935 = vpop.permute.xlu0 %934
        %936 = vrot.lane.b32.xlu0 %v761, 127
        %v937 = vpop.permute.xlu0 %936
        %938 = vrot.lane.b32.xlu0 %v765, 127
        %v939 = vpop.permute.xlu0 %938
        %940 = vrot.lane.b32.xlu0 %v769, 127
        %v941 = vpop.permute.xlu0 %940
        %942 = vrot.lane.b32.xlu0 %v773, 127
        %v943 = vpop.permute.xlu0 %942
        %944 = vrot.lane.b32.xlu0 %v746, 127
        %v945 = vpop.permute.xlu0 %944
        %946 = vrot.lane.b32.xlu0 %v750, 127
        %v947 = vpop.permute.xlu0 %946
        %948 = vrot.lane.b32.xlu0 %v754, 127
        %v949 = vpop.permute.xlu0 %948
        %950 = vrot.lane.b32.xlu0 %v758, 127
        %v951 = vpop.permute.xlu0 %950
        %952 = vrot.lane.b32.xlu0 %v762, 127
        %v953 = vpop.permute.xlu0 %952
        %954 = vrot.lane.b32.xlu0 %v766, 127
        %v955 = vpop.permute.xlu0 %954
        %956 = vrot.lane.b32.xlu0 %v770, 127
        %v957 = vpop.permute.xlu0 %956
        %958 = vrot.lane.b32.xlu0 %v774, 127
        %v959 = vpop.permute.xlu0 %958
        %960 = vrot.lane.b32.xlu0 %v747, 127
        %v961 = vpop.permute.xlu0 %960
        %962 = vrot.lane.b32.xlu0 %v751, 127
        %v963 = vpop.permute.xlu0 %962
        %964 = vrot.lane.b32.xlu0 %v755, 127
        %v965 = vpop.permute.xlu0 %964
        %966 = vrot.lane.b32.xlu0 %v759, 127
        %v967 = vpop.permute.xlu0 %966
        %968 = vrot.lane.b32.xlu0 %v763, 127
        %v969 = vpop.permute.xlu0 %968
        %970 = vrot.lane.b32.xlu0 %v767, 127
        %v971 = vpop.permute.xlu0 %970
        %972 = vrot.lane.b32.xlu0 %v771, 127
        %v973 = vpop.permute.xlu0 %972
        %974 = vrot.lane.b32.xlu0 %v775, 127
        %v975 = vpop.permute.xlu0 %974
        %v976 = vsel %vm452, %v945, %v961
        %v977 = vsel %vm452, %v947, %v963
        %v978 = vsel %vm452, %v949, %v965
        %v979 = vsel %vm452, %v951, %v967
        %v980 = vsel %vm452, %v953, %v969
        %v981 = vsel %vm452, %v955, %v971
        %v982 = vsel %vm452, %v957, %v973
        %v983 = vsel %vm452, %v959, %v975
        %v984 = vsel %vm452, %v929, %v945
        %v985 = vsel %vm452, %v931, %v947
        %v986 = vsel %vm452, %v933, %v949
        %v987 = vsel %vm452, %v935, %v951
        %v988 = vsel %vm452, %v937, %v953
        %v989 = vsel %vm452, %v939, %v955
        %v990 = vsel %vm452, %v941, %v957
        %v991 = vsel %vm452, %v943, %v959
        %v992 = vsel %vm452, %v913, %v929
        %v993 = vsel %vm452, %v915, %v931
        %v994 = vsel %vm452, %v917, %v933
        %v995 = vsel %vm452, %v919, %v935
        %v996 = vsel %vm452, %v921, %v937
        %v997 = vsel %vm452, %v923, %v939
        %v998 = vsel %vm452, %v925, %v941
        %v999 = vsel %vm452, %v927, %v943
        %v1000 = vsel %vm452, %v961, %v913
        %v1001 = vsel %vm452, %v963, %v915
        %v1002 = vsel %vm452, %v965, %v917
        %v1003 = vsel %vm452, %v967, %v919
        %v1004 = vsel %vm452, %v969, %v921
        %v1005 = vsel %vm452, %v971, %v923
        %v1006 = vsel %vm452, %v973, %v925
        %v1007 = vsel %vm452, %v975, %v927
        %v1008 = vsel %vm473, %v992, 0.0
        %v1009 = vsel %vm474, %v984, 0.0
        %v1010 = vsel %vm475, %v976, 0.0
        %v1011 = vsel %vm476, %v1000, 0.0
        %v1012 = vsel %vm473, %v993, 0.0
        %v1013 = vsel %vm474, %v985, 0.0
        %v1014 = vsel %vm475, %v977, 0.0
        %v1015 = vsel %vm476, %v1001, 0.0
        %v1016 = vsel %vm473, %v994, 0.0
        %v1017 = vsel %vm474, %v986, 0.0
        %v1018 = vsel %vm475, %v978, 0.0
        %v1019 = vsel %vm476, %v1002, 0.0
        %v1020 = vsel %vm473, %v995, 0.0
        %v1021 = vsel %vm474, %v987, 0.0
        %v1022 = vsel %vm475, %v979, 0.0
        %v1023 = vsel %vm476, %v1003, 0.0
        %v1024 = vsel %vm473, %v996, 0.0
        %v1025 = vsel %vm474, %v988, 0.0
        %v1026 = vsel %vm475, %v980, 0.0
        %v1027 = vsel %vm476, %v1004, 0.0
        %v1028 = vsel %vm473, %v997, 0.0
        %v1029 = vsel %vm474, %v989, 0.0
        %v1030 = vsel %vm475, %v981, 0.0
        %v1031 = vsel %vm476, %v1005, 0.0
        %v1032 = vsel %vm473, %v998, 0.0
        %v1033 = vsel %vm474, %v990, 0.0
        %v1034 = vsel %vm475, %v982, 0.0
        %v1035 = vsel %vm476, %v1006, 0.0
        %v1036 = vsel %vm473, %v999, 0.0
        %v1037 = vsel %vm474, %v991, 0.0
        %v1038 = vsel %vm475, %v983, 0.0
        %v1039 = vsel %vm476, %v1007, 0.0
        %v1040 = vpack.c.bf16 %v884, %v880
        %v1041 = vpack.c.bf16 %v885, %v881
        %v1042 = vpack.c.bf16 %v886, %v882
        %v1043 = vpack.c.bf16 %v887, %v883
        %v1044 = vpack.c.bf16 %v892, %v888
        %v1045 = vpack.c.bf16 %v893, %v889
        %v1046 = vpack.c.bf16 %v894, %v890
        %v1047 = vpack.c.bf16 %v895, %v891
        %v1048 = vpack.c.bf16 %v900, %v896
        %v1049 = vpack.c.bf16 %v901, %v897
        %v1050 = vpack.c.bf16 %v902, %v898
        %v1051 = vpack.c.bf16 %v903, %v899
        %v1052 = vpack.c.bf16 %v908, %v904
        %v1053 = vpack.c.bf16 %v909, %v905
        %v1054 = vpack.c.bf16 %v910, %v906
        %v1055 = vpack.c.bf16 %v911, %v907
        %v1056 = vpack.c.bf16 %v748, %v744
        %v1057 = vpack.c.bf16 %v749, %v745
        %v1058 = vpack.c.bf16 %v750, %v746
        %v1059 = vpack.c.bf16 %v751, %v747
        %v1060 = vpack.c.bf16 %v756, %v752
        %v1061 = vpack.c.bf16 %v757, %v753
        %v1062 = vpack.c.bf16 %v758, %v754
        %v1063 = vpack.c.bf16 %v759, %v755
        %v1064 = vpack.c.bf16 %v764, %v760
        %v1065 = vpack.c.bf16 %v765, %v761
        %v1066 = vpack.c.bf16 %v766, %v762
        %v1067 = vpack.c.bf16 %v767, %v763
        %v1068 = vpack.c.bf16 %v772, %v768
        %v1069 = vpack.c.bf16 %v773, %v769
        %v1070 = vpack.c.bf16 %v774, %v770
        %v1071 = vpack.c.bf16 %v775, %v771
        %v1072 = vpack.c.bf16 %v1012, %v1008
        %v1073 = vpack.c.bf16 %v1013, %v1009
        %v1074 = vpack.c.bf16 %v1014, %v1010
        %v1075 = vpack.c.bf16 %v1015, %v1011
        %v1076 = vpack.c.bf16 %v1020, %v1016
        %v1077 = vpack.c.bf16 %v1021, %v1017
        %v1078 = vpack.c.bf16 %v1022, %v1018
        %v1079 = vpack.c.bf16 %v1023, %v1019
        %v1080 = vpack.c.bf16 %v1028, %v1024
        %v1081 = vpack.c.bf16 %v1029, %v1025
        %v1082 = vpack.c.bf16 %v1030, %v1026
        %v1083 = vpack.c.bf16 %v1031, %v1027
        %v1084 = vpack.c.bf16 %v1036, %v1032
        %v1085 = vpack.c.bf16 %v1037, %v1033
        %v1086 = vpack.c.bf16 %v1038, %v1034
        %v1087 = vpack.c.bf16 %v1039, %v1035
        %s1088 = scalar_lea.vmem %s3, 64
        %v1089 = vld [vmem:[%s1088] sm:$0xff]
        %v1090 = vld [vmem:[%s1088 + $0x8] sm:$0xff]
        %v1091 = vld [vmem:[%s1088 + $0x10] sm:$0xff]
        %v1092 = vld [vmem:[%s1088 + $0x18] sm:$0xff]
        %v1093 = vld [vmem:[%s1088 + $0x20] sm:$0xff]
        %v1094 = vld [vmem:[%s1088 + $0x28] sm:$0xff]
        %v1095 = vld [vmem:[%s1088 + $0x30] sm:$0xff]
        %v1096 = vld [vmem:[%s1088 + $0x38] sm:$0xff]
        %1098 = vset.pattern.permute.xlu0 0
        %1099 = vperm.xlu0 %1098, %v1089
        %v1100 = vpop.permute.xlu0 %1099
        %1103 = vset.pattern.permute.xlu0 0
        %1104 = vperm.xlu0 %1103, %v1090
        %v1105 = vpop.permute.xlu0 %1104
        %1108 = vset.pattern.permute.xlu0 0
        %1109 = vperm.xlu0 %1108, %v1091
        %v1110 = vpop.permute.xlu0 %1109
        %1113 = vset.pattern.permute.xlu0 0
        %1114 = vperm.xlu0 %1113, %v1092
        %v1115 = vpop.permute.xlu0 %1114
        %1118 = vset.pattern.permute.xlu0 0
        %1119 = vperm.xlu0 %1118, %v1093
        %v1120 = vpop.permute.xlu0 %1119
        %1123 = vset.pattern.permute.xlu0 0
        %1124 = vperm.xlu0 %1123, %v1094
        %v1125 = vpop.permute.xlu0 %1124
        %1128 = vset.pattern.permute.xlu0 0
        %1129 = vperm.xlu0 %1128, %v1095
        %v1130 = vpop.permute.xlu0 %1129
        %1133 = vset.pattern.permute.xlu0 0
        %1134 = vperm.xlu0 %1133, %v1096
        %v1135 = vpop.permute.xlu0 %1134
        %v1145 = vunpack.c.l.b16 %v776
        %v1146 = vunpack.c.h.b16 %v776
        %v1147 = vunpack.c.l.b16 %v777
        %v1148 = vunpack.c.h.b16 %v777
        %v1149 = vunpack.c.l.b16 %v778
        %v1150 = vunpack.c.h.b16 %v778
        %v1151 = vunpack.c.l.b16 %v779
        %v1152 = vunpack.c.h.b16 %v779
        %v1153 = vunpack.c.l.b16 %v780
        %v1154 = vunpack.c.h.b16 %v780
        %v1155 = vunpack.c.l.b16 %v781
        %v1156 = vunpack.c.h.b16 %v781
        %v1157 = vunpack.c.l.b16 %v782
        %v1158 = vunpack.c.h.b16 %v782
        %v1159 = vunpack.c.l.b16 %v783
        %v1160 = vunpack.c.h.b16 %v783
        %v1161 = vpack.c.b16 %v1147, %v1145
        %v1162 = vpack.c.b16 %v1148, %v1146
        %v1163 = vpack.c.b16 %v1151, %v1149
        %v1164 = vpack.c.b16 %v1152, %v1150
        %v1165 = vpack.c.b16 %v1155, %v1153
        %v1166 = vpack.c.b16 %v1156, %v1154
        %v1167 = vpack.c.b16 %v1159, %v1157
        %v1168 = vpack.c.b16 %v1160, %v1158
        %vm1173 = vcmask 523264
        %v1175 = vsel %vm1173, %v1162, 0
        %v1178 = vsel %vm1173, %v1164, 0
        %v1181 = vsel %vm1173, %v1166, 0
        %v1184 = vsel %vm1173, %v1168, 0
        %1186 = vmatprep.subr.bf16.mxu0 %v1041
        %1187 = vmatpush1.bf16.msra.mxu0 %v1040
        %1188 = vmatprep.subr.bf16.mxu0 %v1045
        %1189 = vmatpush1.bf16.msra.mxu0 %v1044
        %1190 = vmatprep.subr.bf16.mxu0 %v1049
        %1191 = vmatpush1.bf16.msra.mxu0 %v1048
        %1192 = vmatprep.subr.bf16.mxu0 %v1053
        %1193 = vmatpush1.bf16.msra.mxu0 %v1052
        %1194 = vmatprep.subr.bf16.mxu0 %v1057
        %1195 = vmatpush1.bf16.msra.mxu0 %v1056
        %1196 = vmatprep.subr.bf16.mxu0 %v1061
        %1197 = vmatpush1.bf16.msra.mxu0 %v1060
        %1198 = vmatprep.subr.bf16.mxu0 %v1065
        %1199 = vmatpush1.bf16.msra.mxu0 %v1064
        %1200 = vmatprep.subr.bf16.mxu0 %v1069
        %1201 = vmatpush1.bf16.msra.mxu0 %v1068
        %1202 = vmatprep.subr.bf16.mxu0 %v1073
        %1203 = vmatpush1.bf16.msra.mxu0 %v1072
        %1204 = vmatprep.subr.bf16.mxu0 %v1077
        %1205 = vmatpush1.bf16.msra.mxu0 %v1076
        %1206 = vmatprep.subr.bf16.mxu0 %v1081
        %1207 = vmatpush1.bf16.msra.mxu0 %v1080
        %1208 = vmatprep.subr.bf16.mxu0 %v1085
        %1209 = vmatpush1.bf16.msra.mxu0 %v1084
        %1210 = vmatprep.subr.bf16.mxu0 0
        %1211 = vmatpush1.bf16.msra.mxu0 0
        %1212 = vmatprep.subr.bf16.mxu0 0
        %1213 = vmatpush1.bf16.msra.mxu0 0
        %1214 = vmatprep.subr.bf16.mxu0 0
        %1215 = vmatpush1.bf16.msra.mxu0 0
        %1216 = vmatprep.subr.bf16.mxu0 0
        %1217 = vmatpush1.bf16.msra.mxu0 0
        %1218 = vmatprep.mubr.bf16.mxu0 %v1175
        %1219 = vmatmul.mubr.bf16.gmra.mrb[0].mxu0 %v1161
        %v1220 = vpop.f32.mrb[0].mxu0
        %v1221 = vadd.f32 %v1100, %v1220
        %v1222 = vpop.f32.mrb[0].mxu0
        %v1223 = vadd.f32 %v1100, %v1222
        %v1224 = vpop.f32.mrb[0].mxu0
        %v1225 = vadd.f32 %v1105, %v1224
        %v1226 = vpop.f32.mrb[0].mxu0
        %v1227 = vadd.f32 %v1105, %v1226
        %1228 = vmatprep.mubr.bf16.mxu0 %v1178
        %1229 = vmatmul.mubr.bf16.gmra.mrb[0].mxu0 %v1163
        %v1230 = vpop.f32.mrb[0].mxu0
        %v1231 = vadd.f32 %v1110, %v1230
        %v1232 = vpop.f32.mrb[0].mxu0
        %v1233 = vadd.f32 %v1110, %v1232
        %v1234 = vpop.f32.mrb[0].mxu0
        %v1235 = vadd.f32 %v1115, %v1234
        %v1236 = vpop.f32.mrb[0].mxu0
        %v1237 = vadd.f32 %v1115, %v1236
        %1238 = vmatprep.mubr.bf16.mxu0 %v1181
        %1239 = vmatmul.mubr.bf16.gmra.mrb[0].mxu0 %v1165
        %v1240 = vpop.f32.mrb[0].mxu0
        %v1241 = vadd.f32 %v1120, %v1240
        %v1242 = vpop.f32.mrb[0].mxu0
        %v1243 = vadd.f32 %v1120, %v1242
        %v1244 = vpop.f32.mrb[0].mxu0
        %v1245 = vadd.f32 %v1125, %v1244
        %v1246 = vpop.f32.mrb[0].mxu0
        %v1247 = vadd.f32 %v1125, %v1246
        %1248 = vmatprep.mubr.bf16.mxu0 %v1184
        %1249 = vmatmul.mubr.bf16.gmra.mrb[0].mxu0 %v1167
        %v1250 = vpop.f32.mrb[0].mxu0
        %v1251 = vadd.f32 %v1130, %v1250
        %v1252 = vpop.f32.mrb[0].mxu0
        %v1253 = vadd.f32 %v1130, %v1252
        %v1254 = vpop.f32.mrb[0].mxu0
        %v1255 = vadd.f32 %v1135, %v1254
        %v1256 = vpop.f32.mrb[0].mxu0
        %v1257 = vadd.f32 %v1135, %v1256
        %1258 = vdwg.mxu0
        %1259 = vmatprep.subr.bf16.mxu0 %v1043
        %1260 = vmatpush1.bf16.msra.mxu0 %v1042
        %1261 = vmatprep.subr.bf16.mxu0 %v1047
        %1262 = vmatpush1.bf16.msra.mxu0 %v1046
        %1263 = vmatprep.subr.bf16.mxu0 %v1051
        %1264 = vmatpush1.bf16.msra.mxu0 %v1050
        %1265 = vmatprep.subr.bf16.mxu0 %v1055
        %1266 = vmatpush1.bf16.msra.mxu0 %v1054
        %1267 = vmatprep.subr.bf16.mxu0 %v1059
        %1268 = vmatpush1.bf16.msra.mxu0 %v1058
        %1269 = vmatprep.subr.bf16.mxu0 %v1063
        %1270 = vmatpush1.bf16.msra.mxu0 %v1062
        %1271 = vmatprep.subr.bf16.mxu0 %v1067
        %1272 = vmatpush1.bf16.msra.mxu0 %v1066
        %1273 = vmatprep.subr.bf16.mxu0 %v1071
        %1274 = vmatpush1.bf16.msra.mxu0 %v1070
        %1275 = vmatprep.subr.bf16.mxu0 %v1075
        %1276 = vmatpush1.bf16.msra.mxu0 %v1074
        %1277 = vmatprep.subr.bf16.mxu0 %v1079
        %1278 = vmatpush1.bf16.msra.mxu0 %v1078
        %1279 = vmatprep.subr.bf16.mxu0 %v1083
        %1280 = vmatpush1.bf16.msra.mxu0 %v1082
        %1281 = vmatprep.subr.bf16.mxu0 %v1087
        %1282 = vmatpush1.bf16.msra.mxu0 %v1086
        %1283 = vmatprep.subr.bf16.mxu0 0
        %1284 = vmatpush1.bf16.msra.mxu0 0
        %1285 = vmatprep.subr.bf16.mxu0 0
        %1286 = vmatpush1.bf16.msra.mxu0 0
        %1287 = vmatprep.subr.bf16.mxu0 0
        %1288 = vmatpush1.bf16.msra.mxu0 0
        %1289 = vmatprep.subr.bf16.mxu0 0
        %1290 = vmatpush1.bf16.msra.mxu0 0
        %1291 = vmatprep.mubr.bf16.mxu0 %v1175
        %1292 = vmatmul.mubr.bf16.gmra.mrb[0].mxu0 %v1161
        %v1293 = vpop.f32.mrb[0].mxu0
        %v1294 = vadd.f32 %v1100, %v1293
        %v1295 = vpop.f32.mrb[0].mxu0
        %v1296 = vadd.f32 %v1100, %v1295
        %v1297 = vpop.f32.mrb[0].mxu0
        %v1298 = vadd.f32 %v1105, %v1297
        %v1299 = vpop.f32.mrb[0].mxu0
        %v1300 = vadd.f32 %v1105, %v1299
        %1301 = vmatprep.mubr.bf16.mxu0 %v1178
        %1302 = vmatmul.mubr.bf16.gmra.mrb[0].mxu0 %v1163
        %v1303 = vpop.f32.mrb[0].mxu0
        %v1304 = vadd.f32 %v1110, %v1303
        %v1305 = vpop.f32.mrb[0].mxu0
        %v1306 = vadd.f32 %v1110, %v1305
        %v1307 = vpop.f32.mrb[0].mxu0
        %v1308 = vadd.f32 %v1115, %v1307
        %v1309 = vpop.f32.mrb[0].mxu0
        %v1310 = vadd.f32 %v1115, %v1309
        %1311 = vmatprep.mubr.bf16.mxu0 %v1181
        %1312 = vmatmul.mubr.bf16.gmra.mrb[0].mxu0 %v1165
        %v1313 = vpop.f32.mrb[0].mxu0
        %v1314 = vadd.f32 %v1120, %v1313
        %v1315 = vpop.f32.mrb[0].mxu0
        %v1316 = vadd.f32 %v1120, %v1315
        %v1317 = vpop.f32.mrb[0].mxu0
        %v1318 = vadd.f32 %v1125, %v1317
        %v1319 = vpop.f32.mrb[0].mxu0
        %v1320 = vadd.f32 %v1125, %v1319
        %1321 = vmatprep.mubr.bf16.mxu0 %v1184
        %1322 = vmatmul.mubr.bf16.gmra.mrb[0].mxu0 %v1167
        %v1323 = vpop.f32.mrb[0].mxu0
        %v1324 = vadd.f32 %v1130, %v1323
        %v1325 = vpop.f32.mrb[0].mxu0
        %v1326 = vadd.f32 %v1130, %v1325
        %v1327 = vpop.f32.mrb[0].mxu0
        %v1328 = vadd.f32 %v1135, %v1327
        %v1329 = vpop.f32.mrb[0].mxu0
        %v1330 = vadd.f32 %v1135, %v1329
        %1331 = vdwg.mxu0
        %v1332 = vld [vmem:[%s4] sm:$0xf]
        %v1333 = vld [vmem:[%s4 + $0x4] sm:$0xf]
        %v1334 = vld [vmem:[%s4 + $0x8] sm:$0xf]
        %v1335 = vld [vmem:[%s4 + $0xc] sm:$0xf]
        %v1336 = vld [vmem:[%s4 + $0x10] sm:$0xf]
        %v1337 = vld [vmem:[%s4 + $0x14] sm:$0xf]
        %v1338 = vld [vmem:[%s4 + $0x18] sm:$0xf]
        %v1339 = vld [vmem:[%s4 + $0x1c] sm:$0xf]
        %s1340 = scalar_lea.vmem %s3, 128
        %v1341 = vld [vmem:[%s1340] sm:$0xff]
        %v1342 = vld [vmem:[%s1340 + $0x8] sm:$0xff]
        %v1343 = vld [vmem:[%s1340 + $0x10] sm:$0xff]
        %v1344 = vld [vmem:[%s1340 + $0x18] sm:$0xff]
        %v1345 = vld [vmem:[%s1340 + $0x20] sm:$0xff]
        %v1346 = vld [vmem:[%s1340 + $0x28] sm:$0xff]
        %v1347 = vld [vmem:[%s1340 + $0x30] sm:$0xff]
        %v1348 = vld [vmem:[%s1340 + $0x38] sm:$0xff]
        %1350 = vset.pattern.permute.xlu0 0
        %1351 = vperm.xlu0 %1350, %v1341
        %v1352 = vpop.permute.xlu0 %1351
        %1355 = vset.pattern.permute.xlu0 0
        %1356 = vperm.xlu0 %1355, %v1342
        %v1357 = vpop.permute.xlu0 %1356
        %1360 = vset.pattern.permute.xlu0 0
        %1361 = vperm.xlu0 %1360, %v1343
        %v1362 = vpop.permute.xlu0 %1361
        %1365 = vset.pattern.permute.xlu0 0
        %1366 = vperm.xlu0 %1365, %v1344
        %v1367 = vpop.permute.xlu0 %1366
        %1370 = vset.pattern.permute.xlu0 0
        %1371 = vperm.xlu0 %1370, %v1345
        %v1372 = vpop.permute.xlu0 %1371
        %1375 = vset.pattern.permute.xlu0 0
        %1376 = vperm.xlu0 %1375, %v1346
        %v1377 = vpop.permute.xlu0 %1376
        %1380 = vset.pattern.permute.xlu0 0
        %1381 = vperm.xlu0 %1380, %v1347
        %v1382 = vpop.permute.xlu0 %1381
        %1385 = vset.pattern.permute.xlu0 0
        %1386 = vperm.xlu0 %1385, %v1348
        %v1387 = vpop.permute.xlu0 %1386
        %v1397 = vunpack.c.l.b16 %v1332
        %v1398 = vunpack.c.l.b16 %v1333
        %v1399 = vunpack.c.l.b16 %v1334
        %v1400 = vunpack.c.l.b16 %v1335
        %v1401 = vunpack.c.l.b16 %v1336
        %v1402 = vunpack.c.l.b16 %v1337
        %v1403 = vunpack.c.l.b16 %v1338
        %v1404 = vunpack.c.l.b16 %v1339
        %v1405 = vpack.c.b16 %v1398, %v1397
        %v1406 = vpack.c.b16 %v1400, %v1399
        %v1407 = vpack.c.b16 %v1402, %v1401
        %v1408 = vpack.c.b16 %v1404, %v1403
        %vm1409 = vcmask 261120
        %v1411 = vsel %vm1409, %v1405, 0
        %v1414 = vsel %vm1409, %v1406, 0
        %v1417 = vsel %vm1409, %v1407, 0
        %v1420 = vsel %vm1409, %v1408, 0
        %1422 = vmatprep.subr.bf16.mxu0 %v502
        %1423 = vmatpush1.bf16.msra.mxu0 %v501
        %1424 = vmatprep.subr.bf16.mxu0 %v506
        %1425 = vmatpush1.bf16.msra.mxu0 %v505
        %1426 = vmatprep.subr.bf16.mxu0 0
        %1427 = vmatpush1.bf16.msra.mxu0 0
        %1428 = vmatprep.subr.bf16.mxu0 0
        %1429 = vmatpush1.bf16.msra.mxu0 0
        %1430 = vmatprep.subr.bf16.mxu0 0
        %1431 = vmatpush1.bf16.msra.mxu0 0
        %1432 = vmatprep.subr.bf16.mxu0 0
        %1433 = vmatpush1.bf16.msra.mxu0 0
        %1434 = vmatprep.subr.bf16.mxu0 0
        %1435 = vmatpush1.bf16.msra.mxu0 0
        %1436 = vmatprep.subr.bf16.mxu0 0
        %1437 = vmatpush1.bf16.msra.mxu0 0
        %1438 = vmatprep.subr.bf16.mxu0 0
        %1439 = vmatpush1.bf16.msra.mxu0 0
        %1440 = vmatprep.subr.bf16.mxu0 0
        %1441 = vmatpush1.bf16.msra.mxu0 0
        %1442 = vmatprep.subr.bf16.mxu0 0
        %1443 = vmatpush1.bf16.msra.mxu0 0
        %1444 = vmatprep.subr.bf16.mxu0 0
        %1445 = vmatpush1.bf16.msra.mxu0 0
        %1446 = vmatprep.subr.bf16.mxu0 0
        %1447 = vmatpush1.bf16.msra.mxu0 0
        %1448 = vmatprep.subr.bf16.mxu0 0
        %1449 = vmatpush1.bf16.msra.mxu0 0
        %1450 = vmatprep.subr.bf16.mxu0 0
        %1451 = vmatpush1.bf16.msra.mxu0 0
        %1452 = vmatprep.subr.bf16.mxu0 0
        %1453 = vmatpush1.bf16.msra.mxu0 0
        %1454 = vmatprep.mubr.bf16.mxu0 0
        %1455 = vmatmul.mubr.bf16.gmra.mrb[0].mxu0 %v1411
        %v1456 = vpop.f32.mrb[0].mxu0
        %v1457 = vadd.f32 %v1352, %v1456
        %v1458 = vpop.f32.mrb[0].mxu0
        %v1459 = vadd.f32 %v1352, %v1458
        %v1460 = vpop.f32.mrb[0].mxu0
        %v1461 = vadd.f32 %v1357, %v1460
        %v1462 = vpop.f32.mrb[0].mxu0
        %v1463 = vadd.f32 %v1357, %v1462
        %1464 = vmatprep.mubr.bf16.mxu0 0
        %1465 = vmatmul.mubr.bf16.gmra.mrb[0].mxu0 %v1414
        %v1466 = vpop.f32.mrb[0].mxu0
        %v1467 = vadd.f32 %v1362, %v1466
        %v1468 = vpop.f32.mrb[0].mxu0
        %v1469 = vadd.f32 %v1362, %v1468
        %v1470 = vpop.f32.mrb[0].mxu0
        %v1471 = vadd.f32 %v1367, %v1470
        %v1472 = vpop.f32.mrb[0].mxu0
        %v1473 = vadd.f32 %v1367, %v1472
        %1474 = vmatprep.mubr.bf16.mxu0 0
        %1475 = vmatmul.mubr.bf16.gmra.mrb[0].mxu0 %v1417
        %v1476 = vpop.f32.mrb[0].mxu0
        %v1477 = vadd.f32 %v1372, %v1476
        %v1478 = vpop.f32.mrb[0].mxu0
        %v1479 = vadd.f32 %v1372, %v1478
        %v1480 = vpop.f32.mrb[0].mxu0
        %v1481 = vadd.f32 %v1377, %v1480
        %v1482 = vpop.f32.mrb[0].mxu0
        %v1483 = vadd.f32 %v1377, %v1482
        %1484 = vmatprep.mubr.bf16.mxu0 0
        %1485 = vmatmul.mubr.bf16.gmra.mrb[0].mxu0 %v1420
        %v1486 = vpop.f32.mrb[0].mxu0
        %v1487 = vadd.f32 %v1382, %v1486
        %v1488 = vpop.f32.mrb[0].mxu0
        %v1489 = vadd.f32 %v1382, %v1488
        %v1490 = vpop.f32.mrb[0].mxu0
        %v1491 = vadd.f32 %v1387, %v1490
        %v1492 = vpop.f32.mrb[0].mxu0
        %v1493 = vadd.f32 %v1387, %v1492
        %1494 = vdwg.mxu0
        %1495 = vmatprep.subr.bf16.mxu0 %v504
        %1496 = vmatpush1.bf16.msra.mxu0 %v503
        %1497 = vmatprep.subr.bf16.mxu0 %v508
        %1498 = vmatpush1.bf16.msra.mxu0 %v507
        %1499 = vmatprep.subr.bf16.mxu0 0
        %1500 = vmatpush1.bf16.msra.mxu0 0
        %1501 = vmatprep.subr.bf16.mxu0 0
        %1502 = vmatpush1.bf16.msra.mxu0 0
        %1503 = vmatprep.subr.bf16.mxu0 0
        %1504 = vmatpush1.bf16.msra.mxu0 0
        %1505 = vmatprep.subr.bf16.mxu0 0
        %1506 = vmatpush1.bf16.msra.mxu0 0
        %1507 = vmatprep.subr.bf16.mxu0 0
        %1508 = vmatpush1.bf16.msra.mxu0 0
        %1509 = vmatprep.subr.bf16.mxu0 0
        %1510 = vmatpush1.bf16.msra.mxu0 0
        %1511 = vmatprep.subr.bf16.mxu0 0
        %1512 = vmatpush1.bf16.msra.mxu0 0
        %1513 = vmatprep.subr.bf16.mxu0 0
        %1514 = vmatpush1.bf16.msra.mxu0 0
        %1515 = vmatprep.subr.bf16.mxu0 0
        %1516 = vmatpush1.bf16.msra.mxu0 0
        %1517 = vmatprep.subr.bf16.mxu0 0
        %1518 = vmatpush1.bf16.msra.mxu0 0
        %1519 = vmatprep.subr.bf16.mxu0 0
        %1520 = vmatpush1.bf16.msra.mxu0 0
        %1521 = vmatprep.subr.bf16.mxu0 0
        %1522 = vmatpush1.bf16.msra.mxu0 0
        %1523 = vmatprep.subr.bf16.mxu0 0
        %1524 = vmatpush1.bf16.msra.mxu0 0
        %1525 = vmatprep.subr.bf16.mxu0 0
        %1526 = vmatpush1.bf16.msra.mxu0 0
        %1527 = vmatprep.mubr.bf16.mxu0 0
        %1528 = vmatmul.mubr.bf16.gmra.mrb[0].mxu0 %v1411
        %v1529 = vpop.f32.mrb[0].mxu0
        %v1530 = vadd.f32 %v1352, %v1529
        %v1531 = vpop.f32.mrb[0].mxu0
        %v1532 = vadd.f32 %v1352, %v1531
        %v1533 = vpop.f32.mrb[0].mxu0
        %v1534 = vadd.f32 %v1357, %v1533
        %v1535 = vpop.f32.mrb[0].mxu0
        %v1536 = vadd.f32 %v1357, %v1535
        %1537 = vmatprep.mubr.bf16.mxu0 0
        %1538 = vmatmul.mubr.bf16.gmra.mrb[0].mxu0 %v1414
        %v1539 = vpop.f32.mrb[0].mxu0
        %v1540 = vadd.f32 %v1362, %v1539
        %v1541 = vpop.f32.mrb[0].mxu0
        %v1542 = vadd.f32 %v1362, %v1541
        %v1543 = vpop.f32.mrb[0].mxu0
        %v1544 = vadd.f32 %v1367, %v1543
        %v1545 = vpop.f32.mrb[0].mxu0
        %v1546 = vadd.f32 %v1367, %v1545
        %1547 = vmatprep.mubr.bf16.mxu0 0
        %1548 = vmatmul.mubr.bf16.gmra.mrb[0].mxu0 %v1417
        %v1549 = vpop.f32.mrb[0].mxu0
        %v1550 = vadd.f32 %v1372, %v1549
        %v1551 = vpop.f32.mrb[0].mxu0
        %v1552 = vadd.f32 %v1372, %v1551
        %v1553 = vpop.f32.mrb[0].mxu0
        %v1554 = vadd.f32 %v1377, %v1553
        %v1555 = vpop.f32.mrb[0].mxu0
        %v1556 = vadd.f32 %v1377, %v1555
        %1557 = vmatprep.mubr.bf16.mxu0 0
        %1558 = vmatmul.mubr.bf16.gmra.mrb[0].mxu0 %v1420
        %v1559 = vpop.f32.mrb[0].mxu0
        %v1560 = vadd.f32 %v1382, %v1559
        %v1561 = vpop.f32.mrb[0].mxu0
        %v1562 = vadd.f32 %v1382, %v1561
        %v1563 = vpop.f32.mrb[0].mxu0
        %v1564 = vadd.f32 %v1387, %v1563
        %v1565 = vpop.f32.mrb[0].mxu0
        %v1566 = vadd.f32 %v1387, %v1565
        %1567 = vdwg.mxu0
        %v1568 = vadd.f32 %v1221, %v1457
        %v1569 = vadd.f32 %v1223, %v1459
        %v1570 = vadd.f32 %v1294, %v1530
        %v1571 = vadd.f32 %v1296, %v1532
        %v1572 = vadd.f32 %v1225, %v1461
        %v1573 = vadd.f32 %v1227, %v1463
        %v1574 = vadd.f32 %v1298, %v1534
        %v1575 = vadd.f32 %v1300, %v1536
        %v1576 = vadd.f32 %v1231, %v1467
        %v1577 = vadd.f32 %v1233, %v1469
        %v1578 = vadd.f32 %v1304, %v1540
        %v1579 = vadd.f32 %v1306, %v1542
        %v1580 = vadd.f32 %v1235, %v1471
        %v1581 = vadd.f32 %v1237, %v1473
        %v1582 = vadd.f32 %v1308, %v1544
        %v1583 = vadd.f32 %v1310, %v1546
        %v1584 = vadd.f32 %v1241, %v1477
        %v1585 = vadd.f32 %v1243, %v1479
        %v1586 = vadd.f32 %v1314, %v1550
        %v1587 = vadd.f32 %v1316, %v1552
        %v1588 = vadd.f32 %v1245, %v1481
        %v1589 = vadd.f32 %v1247, %v1483
        %v1590 = vadd.f32 %v1318, %v1554
        %v1591 = vadd.f32 %v1320, %v1556
        %v1592 = vadd.f32 %v1251, %v1487
        %v1593 = vadd.f32 %v1253, %v1489
        %v1594 = vadd.f32 %v1324, %v1560
        %v1595 = vadd.f32 %v1326, %v1562
        %v1596 = vadd.f32 %v1255, %v1491
        %v1597 = vadd.f32 %v1257, %v1493
        %v1598 = vadd.f32 %v1328, %v1564
        %v1599 = vadd.f32 %v1330, %v1566
        %v1600 = vmax.f32 %v1568, 0.0
        %v1601 = vmax.f32 %v1569, 0.0
        %v1602 = vmax.f32 %v1570, 0.0
        %v1603 = vmax.f32 %v1571, 0.0
        %v1604 = vmax.f32 %v1572, 0.0
        %v1605 = vmax.f32 %v1573, 0.0
        %v1606 = vmax.f32 %v1574, 0.0
        %v1607 = vmax.f32 %v1575, 0.0
        %v1608 = vmax.f32 %v1576, 0.0
        %v1609 = vmax.f32 %v1577, 0.0
        %v1610 = vmax.f32 %v1578, 0.0
        %v1611 = vmax.f32 %v1579, 0.0
        %v1612 = vmax.f32 %v1580, 0.0
        %v1613 = vmax.f32 %v1581, 0.0
        %v1614 = vmax.f32 %v1582, 0.0
        %v1615 = vmax.f32 %v1583, 0.0
        %v1616 = vmax.f32 %v1584, 0.0
        %v1617 = vmax.f32 %v1585, 0.0
        %v1618 = vmax.f32 %v1586, 0.0
        %v1619 = vmax.f32 %v1587, 0.0
        %v1620 = vmax.f32 %v1588, 0.0
        %v1621 = vmax.f32 %v1589, 0.0
        %v1622 = vmax.f32 %v1590, 0.0
        %v1623 = vmax.f32 %v1591, 0.0
        %v1624 = vmax.f32 %v1592, 0.0
        %v1625 = vmax.f32 %v1593, 0.0
        %v1626 = vmax.f32 %v1594, 0.0
        %v1627 = vmax.f32 %v1595, 0.0
        %v1628 = vmax.f32 %v1596, 0.0
        %v1629 = vmax.f32 %v1597, 0.0
        %v1630 = vmax.f32 %v1598, 0.0
        %v1631 = vmax.f32 %v1599, 0.0
        %1632 = vst [vmem:[%s242] sm:$0xff] %v1600
        %1633 = vst [vmem:[%s242 + $0x8] sm:$0xff] %v1601
        %1634 = vst [vmem:[%s242 + $0x10] sm:$0xff] %v1602
        %1635 = vst [vmem:[%s242 + $0x18] sm:$0xff] %v1603
        %1636 = vst [vmem:[%s242 + $0x20] sm:$0xff] %v1604
        %1637 = vst [vmem:[%s242 + $0x28] sm:$0xff] %v1605
        %1638 = vst [vmem:[%s242 + $0x30] sm:$0xff] %v1606
        %1639 = vst [vmem:[%s242 + $0x38] sm:$0xff] %v1607
        %1640 = vst [vmem:[%s242 + $0x40] sm:$0xff] %v1608
        %1641 = vst [vmem:[%s242 + $0x48] sm:$0xff] %v1609
        %1642 = vst [vmem:[%s242 + $0x50] sm:$0xff] %v1610
        %1643 = vst [vmem:[%s242 + $0x58] sm:$0xff] %v1611
        %1644 = vst [vmem:[%s242 + $0x60] sm:$0xff] %v1612
        %1645 = vst [vmem:[%s242 + $0x68] sm:$0xff] %v1613
        %1646 = vst [vmem:[%s242 + $0x70] sm:$0xff] %v1614
        %1647 = vst [vmem:[%s242 + $0x78] sm:$0xff] %v1615
        %1648 = vst [vmem:[%s242 + $0x80] sm:$0xff] %v1616
        %1649 = vst [vmem:[%s242 + $0x88] sm:$0xff] %v1617
        %1650 = vst [vmem:[%s242 + $0x90] sm:$0xff] %v1618
        %1651 = vst [vmem:[%s242 + $0x98] sm:$0xff] %v1619
        %1652 = vst [vmem:[%s242 + $0xa0] sm:$0xff] %v1620
        %1653 = vst [vmem:[%s242 + $0xa8] sm:$0xff] %v1621
        %1654 = vst [vmem:[%s242 + $0xb0] sm:$0xff] %v1622
        %1655 = vst [vmem:[%s242 + $0xb8] sm:$0xff] %v1623
        %1656 = vst [vmem:[%s242 + $0xc0] sm:$0xff] %v1624
        %1657 = vst [vmem:[%s242 + $0xc8] sm:$0xff] %v1625
        %1658 = vst [vmem:[%s242 + $0xd0] sm:$0xff] %v1626
        %1659 = vst [vmem:[%s242 + $0xd8] sm:$0xff] %v1627
        %1660 = vst [vmem:[%s242 + $0xe0] sm:$0xff] %v1628
        %1661 = vst [vmem:[%s242 + $0xe8] sm:$0xff] %v1629
        %1662 = vst [vmem:[%s242 + $0xf0] sm:$0xff] %v1630
        %1663 = vst [vmem:[%s242 + $0xf8] sm:$0xff] %v1631
        %s1664 = sand.u32 %s140, 1
        %s1665 = scalar_lea.sflag [#allocation4], %s1664
        %s1666 = sand.u32 %s140, 1
        %s1667 = smul.addr %s1666, 256
        %s1668 = scalar_lea.vmem [#allocation5], %s1667
        // Predicated region
        $region45: #{tpu_custom_call.1} parent=39 // pred_check
          %p1669 = pneg %p150
        $region46: #{tpu_custom_call.1} parent=39 // pred_check_branch
          %1671 = sbr.rel (%p1669) target = $region48
        $region47: #{tpu_custom_call.1} parent=39 // pred_region
          %s1672 = smul.u32 4, %s22
          %s1674 = ssub.s32 4096, 4096
          %1675 = vsyncadd %s1665, %s1674
          %s1676 = smul.addr %s1672, 128
          %s1677 = scalar_lea.hbm %s5, %s1676
          %s1678 = sshll.u32 %s1668, 4
          %s1679 = int_to_ptr.vmem [resolvable:$true] %s1678
          %1684 = dma.vmem_to_hbm [thread:$0]  %s1679, 4096, %s1677, %s1665, 512, 1024, 32
        $region48: #{tpu_custom_call.1} parent=39 // pred_fallthru
          _
      $region40: #{tpu_custom_call.1} parent=5 // pred_fallthru
        _
      %p1685 = scmp.le.s32.totalorder 2, %s17
      // Predicated region
      $region49: #{tpu_custom_call.1} parent=5 // pred_check
        %p1686 = pneg %p1685
      $region50: #{tpu_custom_call.1} parent=5 // pred_check_branch
        %1688 = sbr.rel (%p1686) target = $region52
      $region51: #{tpu_custom_call.1} parent=5 // pred_region
        %s1689 = ssub.s32 %s17, 2
        // Predicated region
        $region53: #{tpu_custom_call.1} parent=51 // pred_check
          %p1690 = pneg %p156
        $region54: #{tpu_custom_call.1} parent=51 // pred_check_branch
          %1692 = sbr.rel (%p1690) target = $region56
        $region55: #{tpu_custom_call.1} parent=51 // pred_region
          %s1693 = sand.u32 %s141, 1
          %s1694 = scalar_lea.sflag [#allocation4], %s1693
          %s1695 = sand.u32 %s141, 1
          %s1696 = smul.addr %s1695, 256
          %s1697 = scalar_lea.vmem [#allocation5], %s1696
          %1698 = dma.done %s1694, 4096
        $region56: #{tpu_custom_call.1} parent=51 // pred_fallthru
          _
      $region52: #{tpu_custom_call.1} parent=5 // pred_fallthru
        _
    $region6: #{tpu_custom_call.1} parent=1 // loop_footer
      %s21 = sadd.s32 1, %s17
    $region7: #{tpu_custom_call.1} parent=1 // loop_footer_branch
      %16 = sbr.rel target = $region3
    $region8: #{tpu_custom_call.1} parent=1 // loop_exit
      _
    %1699 = vsyncpa [#allocation3], 1
    %s1700 = scalar_lea.sflag [#allocation3], 1
    %1701 = vsyncpa %s1700, 1
    %1702 = vsyncpa [#allocation4], 1
    %s1703 = scalar_lea.sflag [#allocation4], 1
    %1704 = vsyncpa %s1703, 1

</llo_original>
